<compile_context>
chip_gen: v7x
topology: tpu7x:2x2x1
jax: 0.10.0
libtpu: 0.0.40
codegen_flags: <defaults>
</compile_context>

<pallas_src>
import functools

import jax
import jax.numpy as jnp
from jax.experimental import pallas as pl
from jax.experimental.pallas import tpu as pltpu

_BF16_SUBLANE = 16   # packed bf16 sublane tile; batch tiles rounded to this


def _round_up(n, m):
    return ((n + m - 1) // m) * m


def _mlp_kernel(x_ref, w1_ref, b1_ref, w2_ref, b2_ref, w3_ref, b3_ref, o_ref):
    """Fused 3-layer MLP on one batch tile.

    Matmul operands are bf16 (3x MXU throughput vs fp32); accumulation and
    bias adds stay fp32 via preferred_element_type.
    """
    x = x_ref[...].astype(jnp.bfloat16)                          # (bt, Din)

    h1 = jnp.dot(x, w1_ref[...], preferred_element_type=jnp.float32)
    h1 = jnp.maximum(h1 + b1_ref[...], 0.0).astype(jnp.bfloat16)

    h2 = jnp.dot(h1, w2_ref[...], preferred_element_type=jnp.float32)
    h2 = jnp.maximum(h2 + b2_ref[...], 0.0).astype(jnp.bfloat16)

    h3 = jnp.dot(h2, w3_ref[...], preferred_element_type=jnp.float32)
    o_ref[...] = (h3 + b3_ref[...]).astype(o_ref.dtype)


def prepare_params(params):
    """One-time layout prep: bf16 matmul weights, fp32 (1, N) biases.

    Call once after init / checkpoint load and reuse across mlp_forward calls
    so the cast is not re-done per forward pass.
    """
    return {
        "w1": params["w1"].astype(jnp.bfloat16),
        "w2": params["w2"].astype(jnp.bfloat16),
        "w3": params["w3"].astype(jnp.bfloat16),
        "b1": params["b1"].astype(jnp.float32),
        "b2": params["b2"].astype(jnp.float32),
        "b3": params["b3"].astype(jnp.float32),
    }


@functools.partial(jax.jit, static_argnames=("batch_tile",))
def mlp_forward(x, prepared, *, batch_tile=1024):
    """x: (B, Din) float32.  prepared: output of prepare_params (bf16 weights)."""
    w1, b1 = prepared["w1"], prepared["b1"]
    w2, b2 = prepared["w2"], prepared["b2"]
    w3, b3 = prepared["w3"], prepared["b3"]

    B, Din = x.shape
    H1 = w1.shape[1]
    H2 = w2.shape[1]
    Dout = w3.shape[1]

    # ---- batch tiling: big MXU-friendly tiles, rounded to the packed bf16
    # sublane tile (16).  Non-divisible batches are zero-padded on rows only.
    B16 = _round_up(B, _BF16_SUBLANE)
    bt = _round_up(min(max(batch_tile, _BF16_SUBLANE), B16), _BF16_SUBLANE)
    num_tiles = pl.cdiv(B, bt)
    if num_tiles == 1 and B16 > _BF16_SUBLANE:
        # Ensure >= 2 grid steps so both v7x TensorCores get work.
        bt = _round_up(pl.cdiv(B16, 2), _BF16_SUBLANE)
        num_tiles = pl.cdiv(B, bt)
    B_p = num_tiles * bt
    if B_p != B:
        x = jnp.pad(x, ((0, B_p - B), (0, 0)))

    in_specs = [
        pl.BlockSpec((bt, Din), lambda i: (i, 0)),    # x tile (fp32, cast in-kernel)
        pl.BlockSpec((Din, H1), lambda i: (0, 0)),    # w1 (resident, bf16)
        pl.BlockSpec((1, H1), lambda i: (0, 0)),      # b1 (fp32)
        pl.BlockSpec((H1, H2), lambda i: (0, 0)),     # w2 (resident, bf16)
        pl.BlockSpec((1, H2), lambda i: (0, 0)),      # b2 (fp32)
        pl.BlockSpec((H2, Dout), lambda i: (0, 0)),   # w3 (resident, bf16)
        pl.BlockSpec((1, Dout), lambda i: (0, 0)),    # b3 (fp32)
    ]
    out_spec = pl.BlockSpec((bt, Dout), lambda i: (i, 0))

    flops = 2 * B_p * (Din * H1 + H1 * H2 + H2 * Dout)
    bytes_accessed = (
        B_p * Din * 4                                   # x (fp32 in HBM)
        + (Din * H1 + H1 * H2 + H2 * Dout) * 2          # bf16 weights
        + (H1 + H2 + Dout) * 4                          # fp32 biases
        + B_p * Dout * 4                                # fp32 output
    )

    out_p = pl.pallas_call(
        _mlp_kernel,
        out_shape=jax.ShapeDtypeStruct((B_p, Dout), jnp.float32),
        grid_spec=pltpu.PrefetchScalarGridSpec(
            num_scalar_prefetch=0,
            grid=(num_tiles,),
            in_specs=in_specs,
            out_specs=out_spec,
        ),
        compiler_params=pltpu.CompilerParams(
            dimension_semantics=("parallel",),    # megacore / 2-TC sharding
            vmem_limit_bytes=48 * 1024 * 1024,    # headroom for bt up to ~2048
        ),
        cost_estimate=pl.CostEstimate(
            flops=flops, transcendentals=0, bytes_accessed=bytes_accessed),
    )(x, w1, b1, w2, b2, w3, b3)

    # Strip batch padding only (output features are emitted unpadded).
    return out_p[:B] if B_p != B else out_p


def init_mlp_params(key, input_dim, output_dim):
    """Deterministic init matching the module's layer shapes.

    Layers: Linear(input_dim,1024) -> ReLU -> Linear(1024,512) -> ReLU
            -> Linear(512,output_dim).  Weights stored as (in, out).
    """
    hidden_dim = [1024, 512]
    all_dims = [input_dim] + hidden_dim + [output_dim]

    params = {}
    ks = jax.random.split(key, 2 * (len(all_dims) - 1))
    for i in range(len(all_dims) - 1):
        fan_in, fan_out = all_dims[i], all_dims[i + 1]
        bound = 1.0 / jnp.sqrt(fan_in)  # PyTorch default Linear init range
        w = jax.random.uniform(ks[2 * i], (fan_in, fan_out),
                               minval=-bound, maxval=bound, dtype=jnp.float32)
        b = jax.random.uniform(ks[2 * i + 1], (1, fan_out),
                               minval=-bound, maxval=bound, dtype=jnp.float32)
        params[f"w{i + 1}"] = w
        params[f"b{i + 1}"] = b
    return params


def mlp_reference(x, params):
    """Pure-JAX fp32 reference of the same forward pass."""
    h = jnp.maximum(x @ params["w1"] + params["b1"], 0.0)
    h = jnp.maximum(h @ params["w2"] + params["b2"], 0.0)
    return h @ params["w3"] + params["b3"]


if __name__ == "__main__":
    input_dim = 32
    output_dim = 16

    key = jax.random.PRNGKey(0)
    kp, kx1, kx2 = jax.random.split(key, 3)
    params = init_mlp_params(kp, input_dim, output_dim)
    prepared = prepare_params(params)   # one-time bf16 cast, reused below

    # Small demo batch (tile auto-shrinks to the 16-row padded batch).
    x = jax.random.normal(kx1, (8, input_dim), dtype=jnp.float32)
    out = jax.block_until_ready(mlp_forward(x, prepared))
    ref = mlp_reference(x, params)
    assert out.shape == ref.shape
    assert jnp.allclose(out, ref, atol=2e-2, rtol=2e-2), "mismatch vs reference"

    # Non-divisible batch: exercises the cdiv/pad path and a multi-step grid.
    x2 = jax.random.normal(kx2, (200, input_dim), dtype=jnp.float32)
    out2 = jax.block_until_ready(mlp_forward(x2, prepared, batch_tile=128))
    ref2 = mlp_reference(x2, params)
    assert out2.shape == ref2.shape
    assert jnp.allclose(out2, ref2, atol=2e-2, rtol=2e-2), "mismatch vs reference"

    print("KERNEL_OK")
</pallas_src>

<mosaic_0001>
module attributes {stable_mosaic.version = 11 : i64} {
  func.func @_mlp_kernel(%arg0: i32, %arg1: memref<16x32xf32, #tpu.memory_space<vmem>>, %arg2: memref<32x1024xbf16, #tpu.memory_space<vmem>>, %arg3: memref<1x1024xf32, #tpu.memory_space<vmem>>, %arg4: memref<1024x512xbf16, #tpu.memory_space<vmem>>, %arg5: memref<1x512xf32, #tpu.memory_space<vmem>>, %arg6: memref<512x16xbf16, #tpu.memory_space<vmem>>, %arg7: memref<1x16xf32, #tpu.memory_space<vmem>>, %arg8: memref<16x16xf32, #tpu.memory_space<vmem>>) attributes {dimension_semantics = [#tpu.dimension_semantics<parallel>], iteration_bounds = array<i64: 1>, scalar_prefetch = 0 : i64, scratch_operands = 0 : i64, tpu.core_type = #tpu.core_type<tc>, window_params = [{transform_indices = @transform_0, window_bounds = array<i64: 16, 32>}, {pipeline_mode = #tpu.pipeline_mode<synchronous>, transform_indices = @transform_1, window_bounds = array<i64: 32, 1024>}, {pipeline_mode = #tpu.pipeline_mode<synchronous>, transform_indices = @transform_2, window_bounds = array<i64: 1, 1024>}, {pipeline_mode = #tpu.pipeline_mode<synchronous>, transform_indices = @transform_3, window_bounds = array<i64: 1024, 512>}, {pipeline_mode = #tpu.pipeline_mode<synchronous>, transform_indices = @transform_4, window_bounds = array<i64: 1, 512>}, {pipeline_mode = #tpu.pipeline_mode<synchronous>, transform_indices = @transform_5, window_bounds = array<i64: 512, 16>}, {pipeline_mode = #tpu.pipeline_mode<synchronous>, transform_indices = @transform_6, window_bounds = array<i64: 1, 16>}, {transform_indices = @transform_7, window_bounds = array<i64: 16, 16>}]} {
    %c0 = arith.constant 0 : index
    %c0_0 = arith.constant 0 : index
    %0 = vector.load %arg1[%c0, %c0_0] : memref<16x32xf32, #tpu.memory_space<vmem>>, vector<16x32xf32>
    %1 = arith.truncf %0 : vector<16x32xf32> to vector<16x32xbf16>
    %c0_1 = arith.constant 0 : index
    %c0_2 = arith.constant 0 : index
    %2 = vector.load %arg2[%c0_1, %c0_2] : memref<32x1024xbf16, #tpu.memory_space<vmem>>, vector<32x1024xbf16>
    %cst = arith.constant dense<0.000000e+00> : vector<16x1024xf32>
    %3 = tpu.matmul %1, %2, %cst {dimension_numbers = #tpu.dot_dimension_numbers<[1], [0], [0], [1], [0, 0, 1, 1], [], []>} : vector<16x32xbf16>, vector<32x1024xbf16>, vector<16x1024xf32> -> vector<16x1024xf32>
    %c0_3 = arith.constant 0 : index
    %c0_4 = arith.constant 0 : index
    %4 = vector.load %arg3[%c0_3, %c0_4] : memref<1x1024xf32, #tpu.memory_space<vmem>>, vector<1x1024xf32>
    %5 = vector.broadcast %4 : vector<1x1024xf32> to vector<16x1024xf32>
    %6 = arith.addf %3, %5 : vector<16x1024xf32>
    %cst_5 = arith.constant 0.000000e+00 : f32
    %7 = vector.broadcast %cst_5 : f32 to vector<16x1024xf32>
    %8 = arith.maximumf %6, %7 : vector<16x1024xf32>
    %9 = arith.truncf %8 : vector<16x1024xf32> to vector<16x1024xbf16>
    %c0_6 = arith.constant 0 : index
    %c0_7 = arith.constant 0 : index
    %10 = vector.load %arg4[%c0_6, %c0_7] : memref<1024x512xbf16, #tpu.memory_space<vmem>>, vector<1024x512xbf16>
    %cst_8 = arith.constant dense<0.000000e+00> : vector<16x512xf32>
    %11 = tpu.matmul %9, %10, %cst_8 {dimension_numbers = #tpu.dot_dimension_numbers<[1], [0], [0], [1], [0, 0, 1, 1], [], []>} : vector<16x1024xbf16>, vector<1024x512xbf16>, vector<16x512xf32> -> vector<16x512xf32>
    %c0_9 = arith.constant 0 : index
    %c0_10 = arith.constant 0 : index
    %12 = vector.load %arg5[%c0_9, %c0_10] : memref<1x512xf32, #tpu.memory_space<vmem>>, vector<1x512xf32>
    %13 = vector.broadcast %12 : vector<1x512xf32> to vector<16x512xf32>
    %14 = arith.addf %11, %13 : vector<16x512xf32>
    %cst_11 = arith.constant 0.000000e+00 : f32
    %15 = vector.broadcast %cst_11 : f32 to vector<16x512xf32>
    %16 = arith.maximumf %14, %15 : vector<16x512xf32>
    %17 = arith.truncf %16 : vector<16x512xf32> to vector<16x512xbf16>
    %c0_12 = arith.constant 0 : index
    %c0_13 = arith.constant 0 : index
    %18 = vector.load %arg6[%c0_12, %c0_13] : memref<512x16xbf16, #tpu.memory_space<vmem>>, vector<512x16xbf16>
    %cst_14 = arith.constant dense<0.000000e+00> : vector<16x16xf32>
    %19 = tpu.matmul %17, %18, %cst_14 {dimension_numbers = #tpu.dot_dimension_numbers<[1], [0], [0], [1], [0, 0, 1, 1], [], []>} : vector<16x512xbf16>, vector<512x16xbf16>, vector<16x16xf32> -> vector<16x16xf32>
    %c0_15 = arith.constant 0 : index
    %c0_16 = arith.constant 0 : index
    %20 = vector.load %arg7[%c0_15, %c0_16] : memref<1x16xf32, #tpu.memory_space<vmem>>, vector<1x16xf32>
    %21 = vector.broadcast %20 : vector<1x16xf32> to vector<16x16xf32>
    %22 = arith.addf %19, %21 : vector<16x16xf32>
    %c0_17 = arith.constant 0 : index
    %c0_18 = arith.constant 0 : index
    %23 = vector.load %arg8[%c0_17, %c0_18] : memref<16x16xf32, #tpu.memory_space<vmem>>, vector<16x16xf32>
    tpu.vector_store %arg8[%c0_17, %c0_18], %22 {strides = array<i32>} : memref<16x16xf32, #tpu.memory_space<vmem>>, vector<16x16xf32>,
    return
  }
  func.func @transform_0(%arg0: i32) -> (i32, i32) {
    %c0_i32 = arith.constant 0 : i32
    %c0_i32_0 = arith.constant 0 : i32
    return %arg0, %c0_i32 : i32, i32
  }
  func.func @transform_1(%arg0: i32) -> (i32, i32) {
    %c0_i32 = arith.constant 0 : i32
    %c0_i32_0 = arith.constant 0 : i32
    %c0_i32_1 = arith.constant 0 : i32
    return %c0_i32, %c0_i32_0 : i32, i32
  }
  func.func @transform_2(%arg0: i32) -> (i32, i32) {
    %c0_i32 = arith.constant 0 : i32
    %c0_i32_0 = arith.constant 0 : i32
    %c0_i32_1 = arith.constant 0 : i32
    return %c0_i32, %c0_i32_0 : i32, i32
  }
  func.func @transform_3(%arg0: i32) -> (i32, i32) {
    %c0_i32 = arith.constant 0 : i32
    %c0_i32_0 = arith.constant 0 : i32
    %c0_i32_1 = arith.constant 0 : i32
    return %c0_i32, %c0_i32_0 : i32, i32
  }
  func.func @transform_4(%arg0: i32) -> (i32, i32) {
    %c0_i32 = arith.constant 0 : i32
    %c0_i32_0 = arith.constant 0 : i32
    %c0_i32_1 = arith.constant 0 : i32
    return %c0_i32, %c0_i32_0 : i32, i32
  }
  func.func @transform_5(%arg0: i32) -> (i32, i32) {
    %c0_i32 = arith.constant 0 : i32
    %c0_i32_0 = arith.constant 0 : i32
    %c0_i32_1 = arith.constant 0 : i32
    return %c0_i32, %c0_i32_0 : i32, i32
  }
  func.func @transform_6(%arg0: i32) -> (i32, i32) {
    %c0_i32 = arith.constant 0 : i32
    %c0_i32_0 = arith.constant 0 : i32
    %c0_i32_1 = arith.constant 0 : i32
    return %c0_i32, %c0_i32_0 : i32, i32
  }
  func.func @transform_7(%arg0: i32) -> (i32, i32) {
    %c0_i32 = arith.constant 0 : i32
    %c0_i32_0 = arith.constant 0 : i32
    return %arg0, %c0_i32 : i32, i32
  }
}

</mosaic_0001>

<llo_original>
// kernel: mlp_forward.1
$region0: #{mlp_forward.1}
  #allocation0 [shape = 'u32[]', space=smem, size = 0x4, offset = 0x4, fixed_abs, tag = 'smem constant byte address 0x4 - core index']
  #allocation1 [shape = 'u32[144,128]{1,0:T(1,128)}', space=vmem, size = 0x12000, scoped, tag = 'internal scratch']
  %s0 = inlined_call_operand.vmem [shape: f32[16,32], index: 0, kind: input, shape index: {}]
  %s1 = inlined_call_operand.vmem [shape: bf16[32,1024], index: 1, kind: input, shape index: {}]
  %s2 = inlined_call_operand.vmem [shape: f32[1,1024], index: 2, kind: input, shape index: {}]
  %s3 = inlined_call_operand.hbm [shape: bf16[1024,512], index: 3, kind: input, shape index: {}]
  %s4 = inlined_call_operand.vmem [shape: f32[1,512], index: 4, kind: input, shape index: {}]
  %s5 = inlined_call_operand.vmem [shape: bf16[512,16], index: 5, kind: input, shape index: {}]
  %s6 = inlined_call_operand.vmem [shape: f32[1,16], index: 6, kind: input, shape index: {}]
  %s7 = inlined_call_operand.vmem [shape: f32[16,16], index: 7, kind: output, shape index: {}]
  %s8 = sld [smem:[#allocation0]]
  $region42: #{mlp_forward.1} parent=0
    _
  %s10 = ssub.s32 1, %s8
  %s11 = scalar_select 0, %s10, %s8
  $region1: #{mlp_forward.1} parent=0
    #allocation2 [shape = 'u8[1048576]{0}', space=vmem, size = 0x100000, scoped, tag = 'input window, operand 3, single buffered']
    #allocation3 [shape = 's32[1]{0}', space=sflag, size = 0x4, scoped, tag = 'scoped memory for mlp_forward.1']
    %12 = vsyncpa [#allocation3], 0
    // Predicated region
    $region2: #{mlp_forward.1} parent=1 // pred_check
      _
    $region3: #{mlp_forward.1} parent=1 // pred_check_branch
      %14 = sbr.rel (0) target = $region5
    $region4: #{mlp_forward.1} parent=1 // pred_region
      _
    $region5: #{mlp_forward.1} parent=1 // pred_fallthru
      _
    // Predicated region
    $region6: #{mlp_forward.1} parent=1 // pred_check
      _
    $region7: #{mlp_forward.1} parent=1 // pred_check_branch
      %16 = sbr.rel (0) target = $region9
    $region8: #{mlp_forward.1} parent=1 // pred_region
      _
    $region9: #{mlp_forward.1} parent=1 // pred_fallthru
      _
    // Predicated region
    $region10: #{mlp_forward.1} parent=1 // pred_check
      _
    $region11: #{mlp_forward.1} parent=1 // pred_check_branch
      %18 = sbr.rel (0) target = $region13
    $region12: #{mlp_forward.1} parent=1 // pred_region
      _
    $region13: #{mlp_forward.1} parent=1 // pred_fallthru
      _
    // Predicated region
    $region14: #{mlp_forward.1} parent=1 // pred_check
      _
    $region15: #{mlp_forward.1} parent=1 // pred_check_branch
      %20 = sbr.rel (0) target = $region17
    $region16: #{mlp_forward.1} parent=1 // pred_region
      %s22 = ssub.s32 32768, 32768
      %23 = vsyncadd [#allocation3], %s22
      %s24 = sshll.u32 [#allocation2], 4
      %s25 = int_to_ptr.vmem [resolvable:$true] %s24
      %30 = dma.hbm_to_vmem [thread:$0]  %s3, 32768, %s25, [#allocation3], 256, 256, 16
    $region17: #{mlp_forward.1} parent=1 // pred_fallthru
      _
    // Predicated region
    $region18: #{mlp_forward.1} parent=1 // pred_check
      _
    $region19: #{mlp_forward.1} parent=1 // pred_check_branch
      %32 = sbr.rel (0) target = $region21
    $region20: #{mlp_forward.1} parent=1 // pred_region
      _
    $region21: #{mlp_forward.1} parent=1 // pred_fallthru
      _
    // Predicated region
    $region22: #{mlp_forward.1} parent=1 // pred_check
      _
    $region23: #{mlp_forward.1} parent=1 // pred_check_branch
      %34 = sbr.rel (0) target = $region25
    $region24: #{mlp_forward.1} parent=1 // pred_region
      _
    $region25: #{mlp_forward.1} parent=1 // pred_fallthru
      _
    // Predicated region
    $region26: #{mlp_forward.1} parent=1 // pred_check
      _
    $region27: #{mlp_forward.1} parent=1 // pred_check_branch
      %36 = sbr.rel (0) target = $region29
    $region28: #{mlp_forward.1} parent=1 // pred_region
      _
    $region29: #{mlp_forward.1} parent=1 // pred_fallthru
      _
    // Predicated region
    $region30: #{mlp_forward.1} parent=1 // pred_check
      _
    $region31: #{mlp_forward.1} parent=1 // pred_check_branch
      %38 = sbr.rel (0) target = $region33
    $region32: #{mlp_forward.1} parent=1 // pred_region
      %39 = dma.done [#allocation3], 32768
    $region33: #{mlp_forward.1} parent=1 // pred_fallthru
      _
    %v41 = vld [vmem:[%s0] sm:$0xff]
    %v42 = vld [vmem:[%s0 + $0x8] sm:$0xff]
    %v43 = vpack.c.bf16 %v42, %v41
    %v44 = vld [vmem:[%s1] sm:$0xff]
    %v45 = vld [vmem:[%s1 + $0x8] sm:$0xff]
    %v46 = vld [vmem:[%s1 + $0x10] sm:$0xff]
    %v47 = vld [vmem:[%s1 + $0x18] sm:$0xff]
    %v48 = vld [vmem:[%s1 + $0x20] sm:$0xff]
    %v49 = vld [vmem:[%s1 + $0x28] sm:$0xff]
    %v50 = vld [vmem:[%s1 + $0x30] sm:$0xff]
    %v51 = vld [vmem:[%s1 + $0x38] sm:$0xff]
    %v52 = vld [vmem:[%s1 + $0x40] sm:$0xff]
    %v53 = vld [vmem:[%s1 + $0x48] sm:$0xff]
    %v54 = vld [vmem:[%s1 + $0x50] sm:$0xff]
    %v55 = vld [vmem:[%s1 + $0x58] sm:$0xff]
    %v56 = vld [vmem:[%s1 + $0x60] sm:$0xff]
    %v57 = vld [vmem:[%s1 + $0x68] sm:$0xff]
    %v58 = vld [vmem:[%s1 + $0x70] sm:$0xff]
    %v59 = vld [vmem:[%s1 + $0x78] sm:$0xff]
    %v60 = vld [vmem:[%s2] sm:$0xff]
    %v62 = vlaneseq
    %v63 = vshrl.u32 %v62, 7
    %v64 = vsub.s32 0, %v63
    %v65 = vrot.slane %v60, %v64
    %v66 = vlaneseq
    %v67 = vshrl.u32 %v66, 7
    %v68 = vsub.s32 1, %v67
    %v69 = vrot.slane %v60, %v68
    %v70 = vlaneseq
    %v71 = vshrl.u32 %v70, 7
    %v72 = vsub.s32 2, %v71
    %v73 = vrot.slane %v60, %v72
    %v74 = vlaneseq
    %v75 = vshrl.u32 %v74, 7
    %v76 = vsub.s32 3, %v75
    %v77 = vrot.slane %v60, %v76
    %v78 = vlaneseq
    %v79 = vshrl.u32 %v78, 7
    %v80 = vsub.s32 4, %v79
    %v81 = vrot.slane %v60, %v80
    %v82 = vlaneseq
    %v83 = vshrl.u32 %v82, 7
    %v84 = vsub.s32 5, %v83
    %v85 = vrot.slane %v60, %v84
    %v86 = vlaneseq
    %v87 = vshrl.u32 %v86, 7
    %v88 = vsub.s32 6, %v87
    %v89 = vrot.slane %v60, %v88
    %v90 = vlaneseq
    %v91 = vshrl.u32 %v90, 7
    %v92 = vsub.s32 7, %v91
    %v93 = vrot.slane %v60, %v92
    %v118 = vunpack.c.l.b16 %v44
    %v119 = vunpack.c.h.b16 %v44
    %v120 = vunpack.c.l.b16 %v45
    %v121 = vunpack.c.h.b16 %v45
    %v122 = vunpack.c.l.b16 %v46
    %v123 = vunpack.c.h.b16 %v46
    %v124 = vunpack.c.l.b16 %v47
    %v125 = vunpack.c.h.b16 %v47
    %v126 = vunpack.c.l.b16 %v48
    %v127 = vunpack.c.h.b16 %v48
    %v128 = vunpack.c.l.b16 %v49
    %v129 = vunpack.c.h.b16 %v49
    %v130 = vunpack.c.l.b16 %v50
    %v131 = vunpack.c.h.b16 %v50
    %v132 = vunpack.c.l.b16 %v51
    %v133 = vunpack.c.h.b16 %v51
    %v134 = vunpack.c.l.b16 %v52
    %v135 = vunpack.c.h.b16 %v52
    %v136 = vunpack.c.l.b16 %v53
    %v137 = vunpack.c.h.b16 %v53
    %v138 = vunpack.c.l.b16 %v54
    %v139 = vunpack.c.h.b16 %v54
    %v140 = vunpack.c.l.b16 %v55
    %v141 = vunpack.c.h.b16 %v55
    %v142 = vunpack.c.l.b16 %v56
    %v143 = vunpack.c.h.b16 %v56
    %v144 = vunpack.c.l.b16 %v57
    %v145 = vunpack.c.h.b16 %v57
    %v146 = vunpack.c.l.b16 %v58
    %v147 = vunpack.c.h.b16 %v58
    %v148 = vunpack.c.l.b16 %v59
    %v149 = vunpack.c.h.b16 %v59
    %v150 = vpack.c.b16 %v126, %v118
    %v151 = vpack.c.b16 %v127, %v119
    %v152 = vpack.c.b16 %v128, %v120
    %v153 = vpack.c.b16 %v129, %v121
    %v154 = vpack.c.b16 %v130, %v122
    %v155 = vpack.c.b16 %v131, %v123
    %v156 = vpack.c.b16 %v132, %v124
    %v157 = vpack.c.b16 %v133, %v125
    %v158 = vpack.c.b16 %v142, %v134
    %v159 = vpack.c.b16 %v143, %v135
    %v160 = vpack.c.b16 %v144, %v136
    %v161 = vpack.c.b16 %v145, %v137
    %v162 = vpack.c.b16 %v146, %v138
    %v163 = vpack.c.b16 %v147, %v139
    %v164 = vpack.c.b16 %v148, %v140
    %v165 = vpack.c.b16 %v149, %v141
    %vm182 = vcmask 261120
    %v184 = vsel %vm182, %v43, 0
    %186 = vmatprep.subr.bf16.mxu0 %v151
    %187 = vmatpush1.bf16.msra.mxu0 %v150
    %188 = vmatprep.subr.bf16.mxu0 %v159
    %189 = vmatpush1.bf16.msra.mxu0 %v158
    %190 = vmatprep.subr.bf16.mxu0 0
    %191 = vmatpush1.bf16.msra.mxu0 0
    %192 = vmatprep.subr.bf16.mxu0 0
    %193 = vmatpush1.bf16.msra.mxu0 0
    %194 = vmatprep.subr.bf16.mxu0 0
    %195 = vmatpush1.bf16.msra.mxu0 0
    %196 = vmatprep.subr.bf16.mxu0 0
    %197 = vmatpush1.bf16.msra.mxu0 0
    %198 = vmatprep.subr.bf16.mxu0 0
    %199 = vmatpush1.bf16.msra.mxu0 0
    %200 = vmatprep.subr.bf16.mxu0 0
    %201 = vmatpush1.bf16.msra.mxu0 0
    %202 = vmatprep.subr.bf16.mxu0 0
    %203 = vmatpush1.bf16.msra.mxu0 0
    %204 = vmatprep.subr.bf16.mxu0 0
    %205 = vmatpush1.bf16.msra.mxu0 0
    %206 = vmatprep.subr.bf16.mxu0 0
    %207 = vmatpush1.bf16.msra.mxu0 0
    %208 = vmatprep.subr.bf16.mxu0 0
    %209 = vmatpush1.bf16.msra.mxu0 0
    %210 = vmatprep.subr.bf16.mxu0 0
    %211 = vmatpush1.bf16.msra.mxu0 0
    %212 = vmatprep.subr.bf16.mxu0 0
    %213 = vmatpush1.bf16.msra.mxu0 0
    %214 = vmatprep.subr.bf16.mxu0 0
    %215 = vmatpush1.bf16.msra.mxu0 0
    %216 = vmatprep.subr.bf16.mxu0 0
    %217 = vmatpush1.bf16.msra.mxu0 0
    %218 = vmatprep.mubr.bf16.mxu0 0
    %219 = vmatmul.mubr.bf16.gmra.mrb[0].mxu0 %v184
    %v220 = vpop.f32.mrb[0].mxu0
    %v221 = vadd.f32 %v65, %v220
    %v222 = vpop.f32.mrb[0].mxu0
    %v223 = vadd.f32 %v69, %v222
    %v224 = vpop.f32.mrb[0].mxu0
    %v225 = vadd.f32 %v65, %v224
    %v226 = vpop.f32.mrb[0].mxu0
    %v227 = vadd.f32 %v69, %v226
    %228 = vdwg.mxu0
    %229 = vmatprep.subr.bf16.mxu0 %v153
    %230 = vmatpush1.bf16.msra.mxu0 %v152
    %231 = vmatprep.subr.bf16.mxu0 %v161
    %232 = vmatpush1.bf16.msra.mxu0 %v160
    %233 = vmatprep.subr.bf16.mxu0 0
    %234 = vmatpush1.bf16.msra.mxu0 0
    %235 = vmatprep.subr.bf16.mxu0 0
    %236 = vmatpush1.bf16.msra.mxu0 0
    %237 = vmatprep.subr.bf16.mxu0 0
    %238 = vmatpush1.bf16.msra.mxu0 0
    %239 = vmatprep.subr.bf16.mxu0 0
    %240 = vmatpush1.bf16.msra.mxu0 0
    %241 = vmatprep.subr.bf16.mxu0 0
    %242 = vmatpush1.bf16.msra.mxu0 0
    %243 = vmatprep.subr.bf16.mxu0 0
    %244 = vmatpush1.bf16.msra.mxu0 0
    %245 = vmatprep.subr.bf16.mxu0 0
    %246 = vmatpush1.bf16.msra.mxu0 0
    %247 = vmatprep.subr.bf16.mxu0 0
    %248 = vmatpush1.bf16.msra.mxu0 0
    %249 = vmatprep.subr.bf16.mxu0 0
    %250 = vmatpush1.bf16.msra.mxu0 0
    %251 = vmatprep.subr.bf16.mxu0 0
    %252 = vmatpush1.bf16.msra.mxu0 0
    %253 = vmatprep.subr.bf16.mxu0 0
    %254 = vmatpush1.bf16.msra.mxu0 0
    %255 = vmatprep.subr.bf16.mxu0 0
    %256 = vmatpush1.bf16.msra.mxu0 0
    %257 = vmatprep.subr.bf16.mxu0 0
    %258 = vmatpush1.bf16.msra.mxu0 0
    %259 = vmatprep.subr.bf16.mxu0 0
    %260 = vmatpush1.bf16.msra.mxu0 0
    %261 = vmatprep.mubr.bf16.mxu0 0
    %262 = vmatmul.mubr.bf16.gmra.mrb[0].mxu0 %v184
    %v263 = vpop.f32.mrb[0].mxu0
    %v264 = vadd.f32 %v73, %v263
    %v265 = vpop.f32.mrb[0].mxu0
    %v266 = vadd.f32 %v77, %v265
    %v267 = vpop.f32.mrb[0].mxu0
    %v268 = vadd.f32 %v73, %v267
    %v269 = vpop.f32.mrb[0].mxu0
    %v270 = vadd.f32 %v77, %v269
    %271 = vdwg.mxu0
    %272 = vmatprep.subr.bf16.mxu0 %v155
    %273 = vmatpush1.bf16.msra.mxu0 %v154
    %274 = vmatprep.subr.bf16.mxu0 %v163
    %275 = vmatpush1.bf16.msra.mxu0 %v162
    %276 = vmatprep.subr.bf16.mxu0 0
    %277 = vmatpush1.bf16.msra.mxu0 0
    %278 = vmatprep.subr.bf16.mxu0 0
    %279 = vmatpush1.bf16.msra.mxu0 0
    %280 = vmatprep.subr.bf16.mxu0 0
    %281 = vmatpush1.bf16.msra.mxu0 0
    %282 = vmatprep.subr.bf16.mxu0 0
    %283 = vmatpush1.bf16.msra.mxu0 0
    %284 = vmatprep.subr.bf16.mxu0 0
    %285 = vmatpush1.bf16.msra.mxu0 0
    %286 = vmatprep.subr.bf16.mxu0 0
    %287 = vmatpush1.bf16.msra.mxu0 0
    %288 = vmatprep.subr.bf16.mxu0 0
    %289 = vmatpush1.bf16.msra.mxu0 0
    %290 = vmatprep.subr.bf16.mxu0 0
    %291 = vmatpush1.bf16.msra.mxu0 0
    %292 = vmatprep.subr.bf16.mxu0 0
    %293 = vmatpush1.bf16.msra.mxu0 0
    %294 = vmatprep.subr.bf16.mxu0 0
    %295 = vmatpush1.bf16.msra.mxu0 0
    %296 = vmatprep.subr.bf16.mxu0 0
    %297 = vmatpush1.bf16.msra.mxu0 0
    %298 = vmatprep.subr.bf16.mxu0 0
    %299 = vmatpush1.bf16.msra.mxu0 0
    %300 = vmatprep.subr.bf16.mxu0 0
    %301 = vmatpush1.bf16.msra.mxu0 0
    %302 = vmatprep.subr.bf16.mxu0 0
    %303 = vmatpush1.bf16.msra.mxu0 0
    %304 = vmatprep.mubr.bf16.mxu0 0
    %305 = vmatmul.mubr.bf16.gmra.mrb[0].mxu0 %v184
    %v306 = vpop.f32.mrb[0].mxu0
    %v307 = vadd.f32 %v81, %v306
    %v308 = vpop.f32.mrb[0].mxu0
    %v309 = vadd.f32 %v85, %v308
    %v310 = vpop.f32.mrb[0].mxu0
    %v311 = vadd.f32 %v81, %v310
    %v312 = vpop.f32.mrb[0].mxu0
    %v313 = vadd.f32 %v85, %v312
    %314 = vdwg.mxu0
    %315 = vmatprep.subr.bf16.mxu0 %v157
    %316 = vmatpush1.bf16.msra.mxu0 %v156
    %317 = vmatprep.subr.bf16.mxu0 %v165
    %318 = vmatpush1.bf16.msra.mxu0 %v164
    %319 = vmatprep.subr.bf16.mxu0 0
    %320 = vmatpush1.bf16.msra.mxu0 0
    %321 = vmatprep.subr.bf16.mxu0 0
    %322 = vmatpush1.bf16.msra.mxu0 0
    %323 = vmatprep.subr.bf16.mxu0 0
    %324 = vmatpush1.bf16.msra.mxu0 0
    %325 = vmatprep.subr.bf16.mxu0 0
    %326 = vmatpush1.bf16.msra.mxu0 0
    %327 = vmatprep.subr.bf16.mxu0 0
    %328 = vmatpush1.bf16.msra.mxu0 0
    %329 = vmatprep.subr.bf16.mxu0 0
    %330 = vmatpush1.bf16.msra.mxu0 0
    %331 = vmatprep.subr.bf16.mxu0 0
    %332 = vmatpush1.bf16.msra.mxu0 0
    %333 = vmatprep.subr.bf16.mxu0 0
    %334 = vmatpush1.bf16.msra.mxu0 0
    %335 = vmatprep.subr.bf16.mxu0 0
    %336 = vmatpush1.bf16.msra.mxu0 0
    %337 = vmatprep.subr.bf16.mxu0 0
    %338 = vmatpush1.bf16.msra.mxu0 0
    %339 = vmatprep.subr.bf16.mxu0 0
    %340 = vmatpush1.bf16.msra.mxu0 0
    %341 = vmatprep.subr.bf16.mxu0 0
    %342 = vmatpush1.bf16.msra.mxu0 0
    %343 = vmatprep.subr.bf16.mxu0 0
    %344 = vmatpush1.bf16.msra.mxu0 0
    %345 = vmatprep.subr.bf16.mxu0 0
    %346 = vmatpush1.bf16.msra.mxu0 0
    %347 = vmatprep.mubr.bf16.mxu0 0
    %348 = vmatmul.mubr.bf16.gmra.mrb[0].mxu0 %v184
    %v349 = vpop.f32.mrb[0].mxu0
    %v350 = vadd.f32 %v89, %v349
    %v351 = vpop.f32.mrb[0].mxu0
    %v352 = vadd.f32 %v93, %v351
    %v353 = vpop.f32.mrb[0].mxu0
    %v354 = vadd.f32 %v89, %v353
    %v355 = vpop.f32.mrb[0].mxu0
    %v356 = vadd.f32 %v93, %v355
    %357 = vdwg.mxu0
    %v358 = vmax.f32 %v221, 0.0
    %v359 = vmax.f32 %v223, 0.0
    %v360 = vmax.f32 %v264, 0.0
    %v361 = vmax.f32 %v266, 0.0
    %v362 = vmax.f32 %v307, 0.0
    %v363 = vmax.f32 %v309, 0.0
    %v364 = vmax.f32 %v350, 0.0
    %v365 = vmax.f32 %v352, 0.0
    %v366 = vmax.f32 %v225, 0.0
    %v367 = vmax.f32 %v227, 0.0
    %v368 = vmax.f32 %v268, 0.0
    %v369 = vmax.f32 %v270, 0.0
    %v370 = vmax.f32 %v311, 0.0
    %v371 = vmax.f32 %v313, 0.0
    %v372 = vmax.f32 %v354, 0.0
    %v373 = vmax.f32 %v356, 0.0
    %v374 = vpack.c.bf16 %v366, %v358
    %v375 = vpack.c.bf16 %v367, %v359
    %v376 = vpack.c.bf16 %v368, %v360
    %v377 = vpack.c.bf16 %v369, %v361
    %v378 = vpack.c.bf16 %v370, %v362
    %v379 = vpack.c.bf16 %v371, %v363
    %v380 = vpack.c.bf16 %v372, %v364
    %v381 = vpack.c.bf16 %v373, %v365
    %v382 = vld [vmem:[#allocation2] sm:$0xff]
    %v383 = vld [vmem:[#allocation2 + $0x8] sm:$0xff]
    %v384 = vld [vmem:[#allocation2 + $0x10] sm:$0xff]
    %v385 = vld [vmem:[#allocation2 + $0x18] sm:$0xff]
    %v386 = vld [vmem:[#allocation2 + $0x20] sm:$0xff]
    %v387 = vld [vmem:[#allocation2 + $0x28] sm:$0xff]
    %v388 = vld [vmem:[#allocation2 + $0x30] sm:$0xff]
    %v389 = vld [vmem:[#allocation2 + $0x38] sm:$0xff]
    %v390 = vld [vmem:[#allocation2 + $0x40] sm:$0xff]
    %v391 = vld [vmem:[#allocation2 + $0x48] sm:$0xff]
    %v392 = vld [vmem:[#allocation2 + $0x50] sm:$0xff]
    %v393 = vld [vmem:[#allocation2 + $0x58] sm:$0xff]
    %v394 = vld [vmem:[#allocation2 + $0x60] sm:$0xff]
    %v395 = vld [vmem:[#allocation2 + $0x68] sm:$0xff]
    %v396 = vld [vmem:[#allocation2 + $0x70] sm:$0xff]
    %v397 = vld [vmem:[#allocation2 + $0x78] sm:$0xff]
    %v398 = vld [vmem:[#allocation2 + $0x80] sm:$0xff]
    %v399 = vld [vmem:[#allocation2 + $0x88] sm:$0xff]
    %v400 = vld [vmem:[#allocation2 + $0x90] sm:$0xff]
    %v401 = vld [vmem:[#allocation2 + $0x98] sm:$0xff]
    %v402 = vld [vmem:[#allocation2 + $0xa0] sm:$0xff]
    %v403 = vld [vmem:[#allocation2 + $0xa8] sm:$0xff]
    %v404 = vld [vmem:[#allocation2 + $0xb0] sm:$0xff]
    %v405 = vld [vmem:[#allocation2 + $0xb8] sm:$0xff]
    %v406 = vld [vmem:[#allocation2 + $0xc0] sm:$0xff]
    %v407 = vld [vmem:[#allocation2 + $0xc8] sm:$0xff]
    %v408 = vld [vmem:[#allocation2 + $0xd0] sm:$0xff]
    %v409 = vld [vmem:[#allocation2 + $0xd8] sm:$0xff]
    %v410 = vld [vmem:[#allocation2 + $0xe0] sm:$0xff]
    %v411 = vld [vmem:[#allocation2 + $0xe8] sm:$0xff]
    %v412 = vld [vmem:[#allocation2 + $0xf0] sm:$0xff]
    %v413 = vld [vmem:[#allocation2 + $0xf8] sm:$0xff]
    %v414 = vld [vmem:[#allocation2 + $0x100] sm:$0xff]
    %v415 = vld [vmem:[#allocation2 + $0x108] sm:$0xff]
    %v416 = vld [vmem:[#allocation2 + $0x110] sm:$0xff]
    %v417 = vld [vmem:[#allocation2 + $0x118] sm:$0xff]
    %v418 = vld [vmem:[#allocation2 + $0x120] sm:$0xff]
    %v419 = vld [vmem:[#allocation2 + $0x128] sm:$0xff]
    %v420 = vld [vmem:[#allocation2 + $0x130] sm:$0xff]
    %v421 = vld [vmem:[#allocation2 + $0x138] sm:$0xff]
    %v422 = vld [vmem:[#allocation2 + $0x140] sm:$0xff]
    %v423 = vld [vmem:[#allocation2 + $0x148] sm:$0xff]
    %v424 = vld [vmem:[#allocation2 + $0x150] sm:$0xff]
    %v425 = vld [vmem:[#allocation2 + $0x158] sm:$0xff]
    %v426 = vld [vmem:[#allocation2 + $0x160] sm:$0xff]
    %v427 = vld [vmem:[#allocation2 + $0x168] sm:$0xff]
    %v428 = vld [vmem:[#allocation2 + $0x170] sm:$0xff]
    %v429 = vld [vmem:[#allocation2 + $0x178] sm:$0xff]
    %v430 = vld [vmem:[#allocation2 + $0x180] sm:$0xff]
    %v431 = vld [vmem:[#allocation2 + $0x188] sm:$0xff]
    %v432 = vld [vmem:[#allocation2 + $0x190] sm:$0xff]
    %v433 = vld [vmem:[#allocation2 + $0x198] sm:$0xff]
    %v434 = vld [vmem:[#allocation2 + $0x1a0] sm:$0xff]
    %v435 = vld [vmem:[#allocation2 + $0x1a8] sm:$0xff]
    %v436 = vld [vmem:[#allocation2 + $0x1b0] sm:$0xff]
    %v437 = vld [vmem:[#allocation2 + $0x1b8] sm:$0xff]
    %v438 = vld [vmem:[#allocation2 + $0x1c0] sm:$0xff]
    %v439 = vld [vmem:[#allocation2 + $0x1c8] sm:$0xff]
    %v440 = vld [vmem:[#allocation2 + $0x1d0] sm:$0xff]
    %v441 = vld [vmem:[#allocation2 + $0x1d8] sm:$0xff]
    %v442 = vld [vmem:[#allocation2 + $0x1e0] sm:$0xff]
    %v443 = vld [vmem:[#allocation2 + $0x1e8] sm:$0xff]
    %v444 = vld [vmem:[#allocation2 + $0x1f0] sm:$0xff]
    %v445 = vld [vmem:[#allocation2 + $0x1f8] sm:$0xff]
    %v446 = vld [vmem:[#allocation2 + $0x200] sm:$0xff]
    %v447 = vld [vmem:[#allocation2 + $0x208] sm:$0xff]
    %v448 = vld [vmem:[#allocation2 + $0x210] sm:$0xff]
    %v449 = vld [vmem:[#allocation2 + $0x218] sm:$0xff]
    %v450 = vld [vmem:[#allocation2 + $0x220] sm:$0xff]
    %v451 = vld [vmem:[#allocation2 + $0x228] sm:$0xff]
    %v452 = vld [vmem:[#allocation2 + $0x230] sm:$0xff]
    %v453 = vld [vmem:[#allocation2 + $0x238] sm:$0xff]
    %v454 = vld [vmem:[#allocation2 + $0x240] sm:$0xff]
    %v455 = vld [vmem:[#allocation2 + $0x248] sm:$0xff]
    %v456 = vld [vmem:[#allocation2 + $0x250] sm:$0xff]
    %v457 = vld [vmem:[#allocation2 + $0x258] sm:$0xff]
    %v458 = vld [vmem:[#allocation2 + $0x260] sm:$0xff]
    %v459 = vld [vmem:[#allocation2 + $0x268] sm:$0xff]
    %v460 = vld [vmem:[#allocation2 + $0x270] sm:$0xff]
    %v461 = vld [vmem:[#allocation2 + $0x278] sm:$0xff]
    %v462 = vld [vmem:[#allocation2 + $0x280] sm:$0xff]
    %v463 = vld [vmem:[#allocation2 + $0x288] sm:$0xff]
    %v464 = vld [vmem:[#allocation2 + $0x290] sm:$0xff]
    %v465 = vld [vmem:[#allocation2 + $0x298] sm:$0xff]
    %v466 = vld [vmem:[#allocation2 + $0x2a0] sm:$0xff]
    %v467 = vld [vmem:[#allocation2 + $0x2a8] sm:$0xff]
    %v468 = vld [vmem:[#allocation2 + $0x2b0] sm:$0xff]
    %v469 = vld [vmem:[#allocation2 + $0x2b8] sm:$0xff]
    %v470 = vld [vmem:[#allocation2 + $0x2c0] sm:$0xff]
    %v471 = vld [vmem:[#allocation2 + $0x2c8] sm:$0xff]
    %v472 = vld [vmem:[#allocation2 + $0x2d0] sm:$0xff]
    %v473 = vld [vmem:[#allocation2 + $0x2d8] sm:$0xff]
    %v474 = vld [vmem:[#allocation2 + $0x2e0] sm:$0xff]
    %v475 = vld [vmem:[#allocation2 + $0x2e8] sm:$0xff]
    %v476 = vld [vmem:[#allocation2 + $0x2f0] sm:$0xff]
    %v477 = vld [vmem:[#allocation2 + $0x2f8] sm:$0xff]
    %v478 = vld [vmem:[#allocation2 + $0x300] sm:$0xff]
    %v479 = vld [vmem:[#allocation2 + $0x308] sm:$0xff]
    %v480 = vld [vmem:[#allocation2 + $0x310] sm:$0xff]
    %v481 = vld [vmem:[#allocation2 + $0x318] sm:$0xff]
    %v482 = vld [vmem:[#allocation2 + $0x320] sm:$0xff]
    %v483 = vld [vmem:[#allocation2 + $0x328] sm:$0xff]
    %v484 = vld [vmem:[#allocation2 + $0x330] sm:$0xff]
    %v485 = vld [vmem:[#allocation2 + $0x338] sm:$0xff]
    %v486 = vld [vmem:[#allocation2 + $0x340] sm:$0xff]
    %v487 = vld [vmem:[#allocation2 + $0x348] sm:$0xff]
    %v488 = vld [vmem:[#allocation2 + $0x350] sm:$0xff]
    %v489 = vld [vmem:[#allocation2 + $0x358] sm:$0xff]
    %v490 = vld [vmem:[#allocation2 + $0x360] sm:$0xff]
    %v491 = vld [vmem:[#allocation2 + $0x368] sm:$0xff]
    %v492 = vld [vmem:[#allocation2 + $0x370] sm:$0xff]
    %v493 = vld [vmem:[#allocation2 + $0x378] sm:$0xff]
    %v494 = vld [vmem:[#allocation2 + $0x380] sm:$0xff]
    %v495 = vld [vmem:[#allocation2 + $0x388] sm:$0xff]
    %v496 = vld [vmem:[#allocation2 + $0x390] sm:$0xff]
    %v497 = vld [vmem:[#allocation2 + $0x398] sm:$0xff]
    %v498 = vld [vmem:[#allocation2 + $0x3a0] sm:$0xff]
    %v499 = vld [vmem:[#allocation2 + $0x3a8] sm:$0xff]
    %v500 = vld [vmem:[#allocation2 + $0x3b0] sm:$0xff]
    %v501 = vld [vmem:[#allocation2 + $0x3b8] sm:$0xff]
    %v502 = vld [vmem:[#allocation2 + $0x3c0] sm:$0xff]
    %v503 = vld [vmem:[#allocation2 + $0x3c8] sm:$0xff]
    %v504 = vld [vmem:[#allocation2 + $0x3d0] sm:$0xff]
    %v505 = vld [vmem:[#allocation2 + $0x3d8] sm:$0xff]
    %v506 = vld [vmem:[#allocation2 + $0x3e0] sm:$0xff]
    %v507 = vld [vmem:[#allocation2 + $0x3e8] sm:$0xff]
    %v508 = vld [vmem:[#allocation2 + $0x3f0] sm:$0xff]
    %v509 = vld [vmem:[#allocation2 + $0x3f8] sm:$0xff]
    %v510 = vld [vmem:[#allocation2 + $0x400] sm:$0xff]
    %v511 = vld [vmem:[#allocation2 + $0x408] sm:$0xff]
    %v512 = vld [vmem:[#allocation2 + $0x410] sm:$0xff]
    %v513 = vld [vmem:[#allocation2 + $0x418] sm:$0xff]
    %v514 = vld [vmem:[#allocation2 + $0x420] sm:$0xff]
    %v515 = vld [vmem:[#allocation2 + $0x428] sm:$0xff]
    %v516 = vld [vmem:[#allocation2 + $0x430] sm:$0xff]
    %v517 = vld [vmem:[#allocation2 + $0x438] sm:$0xff]
    %v518 = vld [vmem:[#allocation2 + $0x440] sm:$0xff]
    %v519 = vld [vmem:[#allocation2 + $0x448] sm:$0xff]
    %v520 = vld [vmem:[#allocation2 + $0x450] sm:$0xff]
    %v521 = vld [vmem:[#allocation2 + $0x458] sm:$0xff]
    %v522 = vld [vmem:[#allocation2 + $0x460] sm:$0xff]
    %v523 = vld [vmem:[#allocation2 + $0x468] sm:$0xff]
    %v524 = vld [vmem:[#allocation2 + $0x470] sm:$0xff]
    %v525 = vld [vmem:[#allocation2 + $0x478] sm:$0xff]
    %v526 = vld [vmem:[#allocation2 + $0x480] sm:$0xff]
    %v527 = vld [vmem:[#allocation2 + $0x488] sm:$0xff]
    %v528 = vld [vmem:[#allocation2 + $0x490] sm:$0xff]
    %v529 = vld [vmem:[#allocation2 + $0x498] sm:$0xff]
    %v530 = vld [vmem:[#allocation2 + $0x4a0] sm:$0xff]
    %v531 = vld [vmem:[#allocation2 + $0x4a8] sm:$0xff]
    %v532 = vld [vmem:[#allocation2 + $0x4b0] sm:$0xff]
    %v533 = vld [vmem:[#allocation2 + $0x4b8] sm:$0xff]
    %v534 = vld [vmem:[#allocation2 + $0x4c0] sm:$0xff]
    %v535 = vld [vmem:[#allocation2 + $0x4c8] sm:$0xff]
    %v536 = vld [vmem:[#allocation2 + $0x4d0] sm:$0xff]
    %v537 = vld [vmem:[#allocation2 + $0x4d8] sm:$0xff]
    %v538 = vld [vmem:[#allocation2 + $0x4e0] sm:$0xff]
    %v539 = vld [vmem:[#allocation2 + $0x4e8] sm:$0xff]
    %v540 = vld [vmem:[#allocation2 + $0x4f0] sm:$0xff]
    %v541 = vld [vmem:[#allocation2 + $0x4f8] sm:$0xff]
    %v542 = vld [vmem:[#allocation2 + $0x500] sm:$0xff]
    %v543 = vld [vmem:[#allocation2 + $0x508] sm:$0xff]
    %v544 = vld [vmem:[#allocation2 + $0x510] sm:$0xff]
    %v545 = vld [vmem:[#allocation2 + $0x518] sm:$0xff]
    %v546 = vld [vmem:[#allocation2 + $0x520] sm:$0xff]
    %v547 = vld [vmem:[#allocation2 + $0x528] sm:$0xff]
    %v548 = vld [vmem:[#allocation2 + $0x530] sm:$0xff]
    %v549 = vld [vmem:[#allocation2 + $0x538] sm:$0xff]
    %v550 = vld [vmem:[#allocation2 + $0x540] sm:$0xff]
    %v551 = vld [vmem:[#allocation2 + $0x548] sm:$0xff]
    %v552 = vld [vmem:[#allocation2 + $0x550] sm:$0xff]
    %v553 = vld [vmem:[#allocation2 + $0x558] sm:$0xff]
    %v554 = vld [vmem:[#allocation2 + $0x560] sm:$0xff]
    %v555 = vld [vmem:[#allocation2 + $0x568] sm:$0xff]
    %v556 = vld [vmem:[#allocation2 + $0x570] sm:$0xff]
    %v557 = vld [vmem:[#allocation2 + $0x578] sm:$0xff]
    %v558 = vld [vmem:[#allocation2 + $0x580] sm:$0xff]
    %v559 = vld [vmem:[#allocation2 + $0x588] sm:$0xff]
    %v560 = vld [vmem:[#allocation2 + $0x590] sm:$0xff]
    %v561 = vld [vmem:[#allocation2 + $0x598] sm:$0xff]
    %v562 = vld [vmem:[#allocation2 + $0x5a0] sm:$0xff]
    %v563 = vld [vmem:[#allocation2 + $0x5a8] sm:$0xff]
    %v564 = vld [vmem:[#allocation2 + $0x5b0] sm:$0xff]
    %v565 = vld [vmem:[#allocation2 + $0x5b8] sm:$0xff]
    %v566 = vld [vmem:[#allocation2 + $0x5c0] sm:$0xff]
    %v567 = vld [vmem:[#allocation2 + $0x5c8] sm:$0xff]
    %v568 = vld [vmem:[#allocation2 + $0x5d0] sm:$0xff]
    %v569 = vld [vmem:[#allocation2 + $0x5d8] sm:$0xff]
    %v570 = vld [vmem:[#allocation2 + $0x5e0] sm:$0xff]
    %v571 = vld [vmem:[#allocation2 + $0x5e8] sm:$0xff]
    %v572 = vld [vmem:[#allocation2 + $0x5f0] sm:$0xff]
    %v573 = vld [vmem:[#allocation2 + $0x5f8] sm:$0xff]
    %v574 = vld [vmem:[#allocation2 + $0x600] sm:$0xff]
    %v575 = vld [vmem:[#allocation2 + $0x608] sm:$0xff]
    %v576 = vld [vmem:[#allocation2 + $0x610] sm:$0xff]
    %v577 = vld [vmem:[#allocation2 + $0x618] sm:$0xff]
    %v578 = vld [vmem:[#allocation2 + $0x620] sm:$0xff]
    %v579 = vld [vmem:[#allocation2 + $0x628] sm:$0xff]
    %v580 = vld [vmem:[#allocation2 + $0x630] sm:$0xff]
    %v581 = vld [vmem:[#allocation2 + $0x638] sm:$0xff]
    %v582 = vld [vmem:[#allocation2 + $0x640] sm:$0xff]
    %v583 = vld [vmem:[#allocation2 + $0x648] sm:$0xff]
    %v584 = vld [vmem:[#allocation2 + $0x650] sm:$0xff]
    %v585 = vld [vmem:[#allocation2 + $0x658] sm:$0xff]
    %v586 = vld [vmem:[#allocation2 + $0x660] sm:$0xff]
    %v587 = vld [vmem:[#allocation2 + $0x668] sm:$0xff]
    %v588 = vld [vmem:[#allocation2 + $0x670] sm:$0xff]
    %v589 = vld [vmem:[#allocation2 + $0x678] sm:$0xff]
    %v590 = vld [vmem:[#allocation2 + $0x680] sm:$0xff]
    %v591 = vld [vmem:[#allocation2 + $0x688] sm:$0xff]
    %v592 = vld [vmem:[#allocation2 + $0x690] sm:$0xff]
    %v593 = vld [vmem:[#allocation2 + $0x698] sm:$0xff]
    %v594 = vld [vmem:[#allocation2 + $0x6a0] sm:$0xff]
    %v595 = vld [vmem:[#allocation2 + $0x6a8] sm:$0xff]
    %v596 = vld [vmem:[#allocation2 + $0x6b0] sm:$0xff]
    %v597 = vld [vmem:[#allocation2 + $0x6b8] sm:$0xff]
    %v598 = vld [vmem:[#allocation2 + $0x6c0] sm:$0xff]
    %v599 = vld [vmem:[#allocation2 + $0x6c8] sm:$0xff]
    %v600 = vld [vmem:[#allocation2 + $0x6d0] sm:$0xff]
    %v601 = vld [vmem:[#allocation2 + $0x6d8] sm:$0xff]
    %v602 = vld [vmem:[#allocation2 + $0x6e0] sm:$0xff]
    %v603 = vld [vmem:[#allocation2 + $0x6e8] sm:$0xff]
    %v604 = vld [vmem:[#allocation2 + $0x6f0] sm:$0xff]
    %v605 = vld [vmem:[#allocation2 + $0x6f8] sm:$0xff]
    %v606 = vld [vmem:[#allocation2 + $0x700] sm:$0xff]
    %v607 = vld [vmem:[#allocation2 + $0x708] sm:$0xff]
    %v608 = vld [vmem:[#allocation2 + $0x710] sm:$0xff]
    %v609 = vld [vmem:[#allocation2 + $0x718] sm:$0xff]
    %v610 = vld [vmem:[#allocation2 + $0x720] sm:$0xff]
    %v611 = vld [vmem:[#allocation2 + $0x728] sm:$0xff]
    %v612 = vld [vmem:[#allocation2 + $0x730] sm:$0xff]
    %v613 = vld [vmem:[#allocation2 + $0x738] sm:$0xff]
    %v614 = vld [vmem:[#allocation2 + $0x740] sm:$0xff]
    %v615 = vld [vmem:[#allocation2 + $0x748] sm:$0xff]
    %v616 = vld [vmem:[#allocation2 + $0x750] sm:$0xff]
    %v617 = vld [vmem:[#allocation2 + $0x758] sm:$0xff]
    %v618 = vld [vmem:[#allocation2 + $0x760] sm:$0xff]
    %v619 = vld [vmem:[#allocation2 + $0x768] sm:$0xff]
    %v620 = vld [vmem:[#allocation2 + $0x770] sm:$0xff]
    %v621 = vld [vmem:[#allocation2 + $0x778] sm:$0xff]
    %v622 = vld [vmem:[#allocation2 + $0x780] sm:$0xff]
    %v623 = vld [vmem:[#allocation2 + $0x788] sm:$0xff]
    %v624 = vld [vmem:[#allocation2 + $0x790] sm:$0xff]
    %v625 = vld [vmem:[#allocation2 + $0x798] sm:$0xff]
    %v626 = vld [vmem:[#allocation2 + $0x7a0] sm:$0xff]
    %v627 = vld [vmem:[#allocation2 + $0x7a8] sm:$0xff]
    %v628 = vld [vmem:[#allocation2 + $0x7b0] sm:$0xff]
    %v629 = vld [vmem:[#allocation2 + $0x7b8] sm:$0xff]
    %v630 = vld [vmem:[#allocation2 + $0x7c0] sm:$0xff]
    %v631 = vld [vmem:[#allocation2 + $0x7c8] sm:$0xff]
    %v632 = vld [vmem:[#allocation2 + $0x7d0] sm:$0xff]
    %v633 = vld [vmem:[#allocation2 + $0x7d8] sm:$0xff]
    %v634 = vld [vmem:[#allocation2 + $0x7e0] sm:$0xff]
    %v635 = vld [vmem:[#allocation2 + $0x7e8] sm:$0xff]
    %v636 = vld [vmem:[#allocation2 + $0x7f0] sm:$0xff]
    %v637 = vld [vmem:[#allocation2 + $0x7f8] sm:$0xff]
    %v638 = vld [vmem:[%s4] sm:$0xf]
    %v640 = vlaneseq
    %v641 = vshrl.u32 %v640, 7
    %v642 = vsub.s32 0, %v641
    %v643 = vrot.slane %v638, %v642
    %v644 = vlaneseq
    %v645 = vshrl.u32 %v644, 7
    %v646 = vsub.s32 1, %v645
    %v647 = vrot.slane %v638, %v646
    %v648 = vlaneseq
    %v649 = vshrl.u32 %v648, 7
    %v650 = vsub.s32 2, %v649
    %v651 = vrot.slane %v638, %v650
    %v652 = vlaneseq
    %v653 = vshrl.u32 %v652, 7
    %v654 = vsub.s32 3, %v653
    %v655 = vrot.slane %v638, %v654
    %v916 = vunpack.c.l.b16 %v382
    %v917 = vunpack.c.h.b16 %v382
    %v918 = vunpack.c.l.b16 %v383
    %v919 = vunpack.c.h.b16 %v383
    %v920 = vunpack.c.l.b16 %v384
    %v921 = vunpack.c.h.b16 %v384
    %v922 = vunpack.c.l.b16 %v385
    %v923 = vunpack.c.h.b16 %v385
    %v924 = vunpack.c.l.b16 %v386
    %v925 = vunpack.c.h.b16 %v386
    %v926 = vunpack.c.l.b16 %v387
    %v927 = vunpack.c.h.b16 %v387
    %v928 = vunpack.c.l.b16 %v388
    %v929 = vunpack.c.h.b16 %v388
    %v930 = vunpack.c.l.b16 %v389
    %v931 = vunpack.c.h.b16 %v389
    %v932 = vunpack.c.l.b16 %v390
    %v933 = vunpack.c.h.b16 %v390
    %v934 = vunpack.c.l.b16 %v391
    %v935 = vunpack.c.h.b16 %v391
    %v936 = vunpack.c.l.b16 %v392
    %v937 = vunpack.c.h.b16 %v392
    %v938 = vunpack.c.l.b16 %v393
    %v939 = vunpack.c.h.b16 %v393
    %v940 = vunpack.c.l.b16 %v394
    %v941 = vunpack.c.h.b16 %v394
    %v942 = vunpack.c.l.b16 %v395
    %v943 = vunpack.c.h.b16 %v395
    %v944 = vunpack.c.l.b16 %v396
    %v945 = vunpack.c.h.b16 %v396
    %v946 = vunpack.c.l.b16 %v397
    %v947 = vunpack.c.h.b16 %v397
    %v948 = vunpack.c.l.b16 %v398
    %v949 = vunpack.c.h.b16 %v398
    %v950 = vunpack.c.l.b16 %v399
    %v951 = vunpack.c.h.b16 %v399
    %v952 = vunpack.c.l.b16 %v400
    %v953 = vunpack.c.h.b16 %v400
    %v954 = vunpack.c.l.b16 %v401
    %v955 = vunpack.c.h.b16 %v401
    %v956 = vunpack.c.l.b16 %v402
    %v957 = vunpack.c.h.b16 %v402
    %v958 = vunpack.c.l.b16 %v403
    %v959 = vunpack.c.h.b16 %v403
    %v960 = vunpack.c.l.b16 %v404
    %v961 = vunpack.c.h.b16 %v404
    %v962 = vunpack.c.l.b16 %v405
    %v963 = vunpack.c.h.b16 %v405
    %v964 = vunpack.c.l.b16 %v406
    %v965 = vunpack.c.h.b16 %v406
    %v966 = vunpack.c.l.b16 %v407
    %v967 = vunpack.c.h.b16 %v407
    %v968 = vunpack.c.l.b16 %v408
    %v969 = vunpack.c.h.b16 %v408
    %v970 = vunpack.c.l.b16 %v409
    %v971 = vunpack.c.h.b16 %v409
    %v972 = vunpack.c.l.b16 %v410
    %v973 = vunpack.c.h.b16 %v410
    %v974 = vunpack.c.l.b16 %v411
    %v975 = vunpack.c.h.b16 %v411
    %v976 = vunpack.c.l.b16 %v412
    %v977 = vunpack.c.h.b16 %v412
    %v978 = vunpack.c.l.b16 %v413
    %v979 = vunpack.c.h.b16 %v413
    %v980 = vunpack.c.l.b16 %v414
    %v981 = vunpack.c.h.b16 %v414
    %v982 = vunpack.c.l.b16 %v415
    %v983 = vunpack.c.h.b16 %v415
    %v984 = vunpack.c.l.b16 %v416
    %v985 = vunpack.c.h.b16 %v416
    %v986 = vunpack.c.l.b16 %v417
    %v987 = vunpack.c.h.b16 %v417
    %v988 = vunpack.c.l.b16 %v418
    %v989 = vunpack.c.h.b16 %v418
    %v990 = vunpack.c.l.b16 %v419
    %v991 = vunpack.c.h.b16 %v419
    %v992 = vunpack.c.l.b16 %v420
    %v993 = vunpack.c.h.b16 %v420
    %v994 = vunpack.c.l.b16 %v421
    %v995 = vunpack.c.h.b16 %v421
    %v996 = vunpack.c.l.b16 %v422
    %v997 = vunpack.c.h.b16 %v422
    %v998 = vunpack.c.l.b16 %v423
    %v999 = vunpack.c.h.b16 %v423
    %v1000 = vunpack.c.l.b16 %v424
    %v1001 = vunpack.c.h.b16 %v424
    %v1002 = vunpack.c.l.b16 %v425
    %v1003 = vunpack.c.h.b16 %v425
    %v1004 = vunpack.c.l.b16 %v426
    %v1005 = vunpack.c.h.b16 %v426
    %v1006 = vunpack.c.l.b16 %v427
    %v1007 = vunpack.c.h.b16 %v427
    %v1008 = vunpack.c.l.b16 %v428
    %v1009 = vunpack.c.h.b16 %v428
    %v1010 = vunpack.c.l.b16 %v429
    %v1011 = vunpack.c.h.b16 %v429
    %v1012 = vunpack.c.l.b16 %v430
    %v1013 = vunpack.c.h.b16 %v430
    %v1014 = vunpack.c.l.b16 %v431
    %v1015 = vunpack.c.h.b16 %v431
    %v1016 = vunpack.c.l.b16 %v432
    %v1017 = vunpack.c.h.b16 %v432
    %v1018 = vunpack.c.l.b16 %v433
    %v1019 = vunpack.c.h.b16 %v433
    %v1020 = vunpack.c.l.b16 %v434
    %v1021 = vunpack.c.h.b16 %v434
    %v1022 = vunpack.c.l.b16 %v435
    %v1023 = vunpack.c.h.b16 %v435
    %v1024 = vunpack.c.l.b16 %v436
    %v1025 = vunpack.c.h.b16 %v436
    %v1026 = vunpack.c.l.b16 %v437
    %v1027 = vunpack.c.h.b16 %v437
    %v1028 = vunpack.c.l.b16 %v438
    %v1029 = vunpack.c.h.b16 %v438
    %v1030 = vunpack.c.l.b16 %v439
    %v1031 = vunpack.c.h.b16 %v439
    %v1032 = vunpack.c.l.b16 %v440
    %v1033 = vunpack.c.h.b16 %v440
    %v1034 = vunpack.c.l.b16 %v441
    %v1035 = vunpack.c.h.b16 %v441
    %v1036 = vunpack.c.l.b16 %v442
    %v1037 = vunpack.c.h.b16 %v442
    %v1038 = vunpack.c.l.b16 %v443
    %v1039 = vunpack.c.h.b16 %v443
    %v1040 = vunpack.c.l.b16 %v444
    %v1041 = vunpack.c.h.b16 %v444
    %v1042 = vunpack.c.l.b16 %v445
    %v1043 = vunpack.c.h.b16 %v445
    %v1044 = vunpack.c.l.b16 %v446
    %v1045 = vunpack.c.h.b16 %v446
    %v1046 = vunpack.c.l.b16 %v447
    %v1047 = vunpack.c.h.b16 %v447
    %v1048 = vunpack.c.l.b16 %v448
    %v1049 = vunpack.c.h.b16 %v448
    %v1050 = vunpack.c.l.b16 %v449
    %v1051 = vunpack.c.h.b16 %v449
    %v1052 = vunpack.c.l.b16 %v450
    %v1053 = vunpack.c.h.b16 %v450
    %v1054 = vunpack.c.l.b16 %v451
    %v1055 = vunpack.c.h.b16 %v451
    %v1056 = vunpack.c.l.b16 %v452
    %v1057 = vunpack.c.h.b16 %v452
    %v1058 = vunpack.c.l.b16 %v453
    %v1059 = vunpack.c.h.b16 %v453
    %v1060 = vunpack.c.l.b16 %v454
    %v1061 = vunpack.c.h.b16 %v454
    %v1062 = vunpack.c.l.b16 %v455
    %v1063 = vunpack.c.h.b16 %v455
    %v1064 = vunpack.c.l.b16 %v456
    %v1065 = vunpack.c.h.b16 %v456
    %v1066 = vunpack.c.l.b16 %v457
    %v1067 = vunpack.c.h.b16 %v457
    %v1068 = vunpack.c.l.b16 %v458
    %v1069 = vunpack.c.h.b16 %v458
    %v1070 = vunpack.c.l.b16 %v459
    %v1071 = vunpack.c.h.b16 %v459
    %v1072 = vunpack.c.l.b16 %v460
    %v1073 = vunpack.c.h.b16 %v460
    %v1074 = vunpack.c.l.b16 %v461
    %v1075 = vunpack.c.h.b16 %v461
    %v1076 = vunpack.c.l.b16 %v462
    %v1077 = vunpack.c.h.b16 %v462
    %v1078 = vunpack.c.l.b16 %v463
    %v1079 = vunpack.c.h.b16 %v463
    %v1080 = vunpack.c.l.b16 %v464
    %v1081 = vunpack.c.h.b16 %v464
    %v1082 = vunpack.c.l.b16 %v465
    %v1083 = vunpack.c.h.b16 %v465
    %v1084 = vunpack.c.l.b16 %v466
    %v1085 = vunpack.c.h.b16 %v466
    %v1086 = vunpack.c.l.b16 %v467
    %v1087 = vunpack.c.h.b16 %v467
    %v1088 = vunpack.c.l.b16 %v468
    %v1089 = vunpack.c.h.b16 %v468
    %v1090 = vunpack.c.l.b16 %v469
    %v1091 = vunpack.c.h.b16 %v469
    %v1092 = vunpack.c.l.b16 %v470
    %v1093 = vunpack.c.h.b16 %v470
    %v1094 = vunpack.c.l.b16 %v471
    %v1095 = vunpack.c.h.b16 %v471
    %v1096 = vunpack.c.l.b16 %v472
    %v1097 = vunpack.c.h.b16 %v472
    %v1098 = vunpack.c.l.b16 %v473
    %v1099 = vunpack.c.h.b16 %v473
    %v1100 = vunpack.c.l.b16 %v474
    %v1101 = vunpack.c.h.b16 %v474
    %v1102 = vunpack.c.l.b16 %v475
    %v1103 = vunpack.c.h.b16 %v475
    %v1104 = vunpack.c.l.b16 %v476
    %v1105 = vunpack.c.h.b16 %v476
    %v1106 = vunpack.c.l.b16 %v477
    %v1107 = vunpack.c.h.b16 %v477
    %v1108 = vunpack.c.l.b16 %v478
    %v1109 = vunpack.c.h.b16 %v478
    %v1110 = vunpack.c.l.b16 %v479
    %v1111 = vunpack.c.h.b16 %v479
    %v1112 = vunpack.c.l.b16 %v480
    %v1113 = vunpack.c.h.b16 %v480
    %v1114 = vunpack.c.l.b16 %v481
    %v1115 = vunpack.c.h.b16 %v481
    %v1116 = vunpack.c.l.b16 %v482
    %v1117 = vunpack.c.h.b16 %v482
    %v1118 = vunpack.c.l.b16 %v483
    %v1119 = vunpack.c.h.b16 %v483
    %v1120 = vunpack.c.l.b16 %v484
    %v1121 = vunpack.c.h.b16 %v484
    %v1122 = vunpack.c.l.b16 %v485
    %v1123 = vunpack.c.h.b16 %v485
    %v1124 = vunpack.c.l.b16 %v486
    %v1125 = vunpack.c.h.b16 %v486
    %v1126 = vunpack.c.l.b16 %v487
    %v1127 = vunpack.c.h.b16 %v487
    %v1128 = vunpack.c.l.b16 %v488
    %v1129 = vunpack.c.h.b16 %v488
    %v1130 = vunpack.c.l.b16 %v489
    %v1131 = vunpack.c.h.b16 %v489
    %v1132 = vunpack.c.l.b16 %v490
    %v1133 = vunpack.c.h.b16 %v490
    %v1134 = vunpack.c.l.b16 %v491
    %v1135 = vunpack.c.h.b16 %v491
    %v1136 = vunpack.c.l.b16 %v492
    %v1137 = vunpack.c.h.b16 %v492
    %v1138 = vunpack.c.l.b16 %v493
    %v1139 = vunpack.c.h.b16 %v493
    %v1140 = vunpack.c.l.b16 %v494
    %v1141 = vunpack.c.h.b16 %v494
    %v1142 = vunpack.c.l.b16 %v495
    %v1143 = vunpack.c.h.b16 %v495
    %v1144 = vunpack.c.l.b16 %v496
    %v1145 = vunpack.c.h.b16 %v496
    %v1146 = vunpack.c.l.b16 %v497
    %v1147 = vunpack.c.h.b16 %v497
    %v1148 = vunpack.c.l.b16 %v498
    %v1149 = vunpack.c.h.b16 %v498
    %v1150 = vunpack.c.l.b16 %v499
    %v1151 = vunpack.c.h.b16 %v499
    %v1152 = vunpack.c.l.b16 %v500
    %v1153 = vunpack.c.h.b16 %v500
    %v1154 = vunpack.c.l.b16 %v501
    %v1155 = vunpack.c.h.b16 %v501
    %v1156 = vunpack.c.l.b16 %v502
    %v1157 = vunpack.c.h.b16 %v502
    %v1158 = vunpack.c.l.b16 %v503
    %v1159 = vunpack.c.h.b16 %v503
    %v1160 = vunpack.c.l.b16 %v504
    %v1161 = vunpack.c.h.b16 %v504
    %v1162 = vunpack.c.l.b16 %v505
    %v1163 = vunpack.c.h.b16 %v505
    %v1164 = vunpack.c.l.b16 %v506
    %v1165 = vunpack.c.h.b16 %v506
    %v1166 = vunpack.c.l.b16 %v507
    %v1167 = vunpack.c.h.b16 %v507
    %v1168 = vunpack.c.l.b16 %v508
    %v1169 = vunpack.c.h.b16 %v508
    %v1170 = vunpack.c.l.b16 %v509
    %v1171 = vunpack.c.h.b16 %v509
    %v1172 = vunpack.c.l.b16 %v510
    %v1173 = vunpack.c.h.b16 %v510
    %v1174 = vunpack.c.l.b16 %v511
    %v1175 = vunpack.c.h.b16 %v511
    %v1176 = vunpack.c.l.b16 %v512
    %v1177 = vunpack.c.h.b16 %v512
    %v1178 = vunpack.c.l.b16 %v513
    %v1179 = vunpack.c.h.b16 %v513
    %v1180 = vunpack.c.l.b16 %v514
    %v1181 = vunpack.c.h.b16 %v514
    %v1182 = vunpack.c.l.b16 %v515
    %v1183 = vunpack.c.h.b16 %v515
    %v1184 = vunpack.c.l.b16 %v516
    %v1185 = vunpack.c.h.b16 %v516
    %v1186 = vunpack.c.l.b16 %v517
    %v1187 = vunpack.c.h.b16 %v517
    %v1188 = vunpack.c.l.b16 %v518
    %v1189 = vunpack.c.h.b16 %v518
    %v1190 = vunpack.c.l.b16 %v519
    %v1191 = vunpack.c.h.b16 %v519
    %v1192 = vunpack.c.l.b16 %v520
    %v1193 = vunpack.c.h.b16 %v520
    %v1194 = vunpack.c.l.b16 %v521
    %v1195 = vunpack.c.h.b16 %v521
    %v1196 = vunpack.c.l.b16 %v522
    %v1197 = vunpack.c.h.b16 %v522
    %v1198 = vunpack.c.l.b16 %v523
    %v1199 = vunpack.c.h.b16 %v523
    %v1200 = vunpack.c.l.b16 %v524
    %v1201 = vunpack.c.h.b16 %v524
    %v1202 = vunpack.c.l.b16 %v525
    %v1203 = vunpack.c.h.b16 %v525
    %v1204 = vunpack.c.l.b16 %v526
    %v1205 = vunpack.c.h.b16 %v526
    %v1206 = vunpack.c.l.b16 %v527
    %v1207 = vunpack.c.h.b16 %v527
    %v1208 = vunpack.c.l.b16 %v528
    %v1209 = vunpack.c.h.b16 %v528
    %v1210 = vunpack.c.l.b16 %v529
    %v1211 = vunpack.c.h.b16 %v529
    %v1212 = vunpack.c.l.b16 %v530
    %v1213 = vunpack.c.h.b16 %v530
    %v1214 = vunpack.c.l.b16 %v531
    %v1215 = vunpack.c.h.b16 %v531
    %v1216 = vunpack.c.l.b16 %v532
    %v1217 = vunpack.c.h.b16 %v532
    %v1218 = vunpack.c.l.b16 %v533
    %v1219 = vunpack.c.h.b16 %v533
    %v1220 = vunpack.c.l.b16 %v534
    %v1221 = vunpack.c.h.b16 %v534
    %v1222 = vunpack.c.l.b16 %v535
    %v1223 = vunpack.c.h.b16 %v535
    %v1224 = vunpack.c.l.b16 %v536
    %v1225 = vunpack.c.h.b16 %v536
    %v1226 = vunpack.c.l.b16 %v537
    %v1227 = vunpack.c.h.b16 %v537
    %v1228 = vunpack.c.l.b16 %v538
    %v1229 = vunpack.c.h.b16 %v538
    %v1230 = vunpack.c.l.b16 %v539
    %v1231 = vunpack.c.h.b16 %v539
    %v1232 = vunpack.c.l.b16 %v540
    %v1233 = vunpack.c.h.b16 %v540
    %v1234 = vunpack.c.l.b16 %v541
    %v1235 = vunpack.c.h.b16 %v541
    %v1236 = vunpack.c.l.b16 %v542
    %v1237 = vunpack.c.h.b16 %v542
    %v1238 = vunpack.c.l.b16 %v543
    %v1239 = vunpack.c.h.b16 %v543
    %v1240 = vunpack.c.l.b16 %v544
    %v1241 = vunpack.c.h.b16 %v544
    %v1242 = vunpack.c.l.b16 %v545
    %v1243 = vunpack.c.h.b16 %v545
    %v1244 = vunpack.c.l.b16 %v546
    %v1245 = vunpack.c.h.b16 %v546
    %v1246 = vunpack.c.l.b16 %v547
    %v1247 = vunpack.c.h.b16 %v547
    %v1248 = vunpack.c.l.b16 %v548
    %v1249 = vunpack.c.h.b16 %v548
    %v1250 = vunpack.c.l.b16 %v549
    %v1251 = vunpack.c.h.b16 %v549
    %v1252 = vunpack.c.l.b16 %v550
    %v1253 = vunpack.c.h.b16 %v550
    %v1254 = vunpack.c.l.b16 %v551
    %v1255 = vunpack.c.h.b16 %v551
    %v1256 = vunpack.c.l.b16 %v552
    %v1257 = vunpack.c.h.b16 %v552
    %v1258 = vunpack.c.l.b16 %v553
    %v1259 = vunpack.c.h.b16 %v553
    %v1260 = vunpack.c.l.b16 %v554
    %v1261 = vunpack.c.h.b16 %v554
    %v1262 = vunpack.c.l.b16 %v555
    %v1263 = vunpack.c.h.b16 %v555
    %v1264 = vunpack.c.l.b16 %v556
    %v1265 = vunpack.c.h.b16 %v556
    %v1266 = vunpack.c.l.b16 %v557
    %v1267 = vunpack.c.h.b16 %v557
    %v1268 = vunpack.c.l.b16 %v558
    %v1269 = vunpack.c.h.b16 %v558
    %v1270 = vunpack.c.l.b16 %v559
    %v1271 = vunpack.c.h.b16 %v559
    %v1272 = vunpack.c.l.b16 %v560
    %v1273 = vunpack.c.h.b16 %v560
    %v1274 = vunpack.c.l.b16 %v561
    %v1275 = vunpack.c.h.b16 %v561
    %v1276 = vunpack.c.l.b16 %v562
    %v1277 = vunpack.c.h.b16 %v562
    %v1278 = vunpack.c.l.b16 %v563
    %v1279 = vunpack.c.h.b16 %v563
    %v1280 = vunpack.c.l.b16 %v564
    %v1281 = vunpack.c.h.b16 %v564
    %v1282 = vunpack.c.l.b16 %v565
    %v1283 = vunpack.c.h.b16 %v565
    %v1284 = vunpack.c.l.b16 %v566
    %v1285 = vunpack.c.h.b16 %v566
    %v1286 = vunpack.c.l.b16 %v567
    %v1287 = vunpack.c.h.b16 %v567
    %v1288 = vunpack.c.l.b16 %v568
    %v1289 = vunpack.c.h.b16 %v568
    %v1290 = vunpack.c.l.b16 %v569
    %v1291 = vunpack.c.h.b16 %v569
    %v1292 = vunpack.c.l.b16 %v570
    %v1293 = vunpack.c.h.b16 %v570
    %v1294 = vunpack.c.l.b16 %v571
    %v1295 = vunpack.c.h.b16 %v571
    %v1296 = vunpack.c.l.b16 %v572
    %v1297 = vunpack.c.h.b16 %v572
    %v1298 = vunpack.c.l.b16 %v573
    %v1299 = vunpack.c.h.b16 %v573
    %v1300 = vunpack.c.l.b16 %v574
    %v1301 = vunpack.c.h.b16 %v574
    %v1302 = vunpack.c.l.b16 %v575
    %v1303 = vunpack.c.h.b16 %v575
    %v1304 = vunpack.c.l.b16 %v576
    %v1305 = vunpack.c.h.b16 %v576
    %v1306 = vunpack.c.l.b16 %v577
    %v1307 = vunpack.c.h.b16 %v577
    %v1308 = vunpack.c.l.b16 %v578
    %v1309 = vunpack.c.h.b16 %v578
    %v1310 = vunpack.c.l.b16 %v579
    %v1311 = vunpack.c.h.b16 %v579
    %v1312 = vunpack.c.l.b16 %v580
    %v1313 = vunpack.c.h.b16 %v580
    %v1314 = vunpack.c.l.b16 %v581
    %v1315 = vunpack.c.h.b16 %v581
    %v1316 = vunpack.c.l.b16 %v582
    %v1317 = vunpack.c.h.b16 %v582
    %v1318 = vunpack.c.l.b16 %v583
    %v1319 = vunpack.c.h.b16 %v583
    %v1320 = vunpack.c.l.b16 %v584
    %v1321 = vunpack.c.h.b16 %v584
    %v1322 = vunpack.c.l.b16 %v585
    %v1323 = vunpack.c.h.b16 %v585
    %v1324 = vunpack.c.l.b16 %v586
    %v1325 = vunpack.c.h.b16 %v586
    %v1326 = vunpack.c.l.b16 %v587
    %v1327 = vunpack.c.h.b16 %v587
    %v1328 = vunpack.c.l.b16 %v588
    %v1329 = vunpack.c.h.b16 %v588
    %v1330 = vunpack.c.l.b16 %v589
    %v1331 = vunpack.c.h.b16 %v589
    %v1332 = vunpack.c.l.b16 %v590
    %v1333 = vunpack.c.h.b16 %v590
    %v1334 = vunpack.c.l.b16 %v591
    %v1335 = vunpack.c.h.b16 %v591
    %v1336 = vunpack.c.l.b16 %v592
    %v1337 = vunpack.c.h.b16 %v592
    %v1338 = vunpack.c.l.b16 %v593
    %v1339 = vunpack.c.h.b16 %v593
    %v1340 = vunpack.c.l.b16 %v594
    %v1341 = vunpack.c.h.b16 %v594
    %v1342 = vunpack.c.l.b16 %v595
    %v1343 = vunpack.c.h.b16 %v595
    %v1344 = vunpack.c.l.b16 %v596
    %v1345 = vunpack.c.h.b16 %v596
    %v1346 = vunpack.c.l.b16 %v597
    %v1347 = vunpack.c.h.b16 %v597
    %v1348 = vunpack.c.l.b16 %v598
    %v1349 = vunpack.c.h.b16 %v598
    %v1350 = vunpack.c.l.b16 %v599
    %v1351 = vunpack.c.h.b16 %v599
    %v1352 = vunpack.c.l.b16 %v600
    %v1353 = vunpack.c.h.b16 %v600
    %v1354 = vunpack.c.l.b16 %v601
    %v1355 = vunpack.c.h.b16 %v601
    %v1356 = vunpack.c.l.b16 %v602
    %v1357 = vunpack.c.h.b16 %v602
    %v1358 = vunpack.c.l.b16 %v603
    %v1359 = vunpack.c.h.b16 %v603
    %v1360 = vunpack.c.l.b16 %v604
    %v1361 = vunpack.c.h.b16 %v604
    %v1362 = vunpack.c.l.b16 %v605
    %v1363 = vunpack.c.h.b16 %v605
    %v1364 = vunpack.c.l.b16 %v606
    %v1365 = vunpack.c.h.b16 %v606
    %v1366 = vunpack.c.l.b16 %v607
    %v1367 = vunpack.c.h.b16 %v607
    %v1368 = vunpack.c.l.b16 %v608
    %v1369 = vunpack.c.h.b16 %v608
    %v1370 = vunpack.c.l.b16 %v609
    %v1371 = vunpack.c.h.b16 %v609
    %v1372 = vunpack.c.l.b16 %v610
    %v1373 = vunpack.c.h.b16 %v610
    %v1374 = vunpack.c.l.b16 %v611
    %v1375 = vunpack.c.h.b16 %v611
    %v1376 = vunpack.c.l.b16 %v612
    %v1377 = vunpack.c.h.b16 %v612
    %v1378 = vunpack.c.l.b16 %v613
    %v1379 = vunpack.c.h.b16 %v613
    %v1380 = vunpack.c.l.b16 %v614
    %v1381 = vunpack.c.h.b16 %v614
    %v1382 = vunpack.c.l.b16 %v615
    %v1383 = vunpack.c.h.b16 %v615
    %v1384 = vunpack.c.l.b16 %v616
    %v1385 = vunpack.c.h.b16 %v616
    %v1386 = vunpack.c.l.b16 %v617
    %v1387 = vunpack.c.h.b16 %v617
    %v1388 = vunpack.c.l.b16 %v618
    %v1389 = vunpack.c.h.b16 %v618
    %v1390 = vunpack.c.l.b16 %v619
    %v1391 = vunpack.c.h.b16 %v619
    %v1392 = vunpack.c.l.b16 %v620
    %v1393 = vunpack.c.h.b16 %v620
    %v1394 = vunpack.c.l.b16 %v621
    %v1395 = vunpack.c.h.b16 %v621
    %v1396 = vunpack.c.l.b16 %v622
    %v1397 = vunpack.c.h.b16 %v622
    %v1398 = vunpack.c.l.b16 %v623
    %v1399 = vunpack.c.h.b16 %v623
    %v1400 = vunpack.c.l.b16 %v624
    %v1401 = vunpack.c.h.b16 %v624
    %v1402 = vunpack.c.l.b16 %v625
    %v1403 = vunpack.c.h.b16 %v625
    %v1404 = vunpack.c.l.b16 %v626
    %v1405 = vunpack.c.h.b16 %v626
    %v1406 = vunpack.c.l.b16 %v627
    %v1407 = vunpack.c.h.b16 %v627
    %v1408 = vunpack.c.l.b16 %v628
    %v1409 = vunpack.c.h.b16 %v628
    %v1410 = vunpack.c.l.b16 %v629
    %v1411 = vunpack.c.h.b16 %v629
    %v1412 = vunpack.c.l.b16 %v630
    %v1413 = vunpack.c.h.b16 %v630
    %v1414 = vunpack.c.l.b16 %v631
    %v1415 = vunpack.c.h.b16 %v631
    %v1416 = vunpack.c.l.b16 %v632
    %v1417 = vunpack.c.h.b16 %v632
    %v1418 = vunpack.c.l.b16 %v633
    %v1419 = vunpack.c.h.b16 %v633
    %v1420 = vunpack.c.l.b16 %v634
    %v1421 = vunpack.c.h.b16 %v634
    %v1422 = vunpack.c.l.b16 %v635
    %v1423 = vunpack.c.h.b16 %v635
    %v1424 = vunpack.c.l.b16 %v636
    %v1425 = vunpack.c.h.b16 %v636
    %v1426 = vunpack.c.l.b16 %v637
    %v1427 = vunpack.c.h.b16 %v637
    %v1428 = vpack.c.b16 %v920, %v916
    %v1429 = vpack.c.b16 %v921, %v917
    %v1430 = vpack.c.b16 %v922, %v918
    %v1431 = vpack.c.b16 %v923, %v919
    %v1432 = vpack.c.b16 %v928, %v924
    %v1433 = vpack.c.b16 %v929, %v925
    %v1434 = vpack.c.b16 %v930, %v926
    %v1435 = vpack.c.b16 %v931, %v927
    %v1436 = vpack.c.b16 %v936, %v932
    %v1437 = vpack.c.b16 %v937, %v933
    %v1438 = vpack.c.b16 %v938, %v934
    %v1439 = vpack.c.b16 %v939, %v935
    %v1440 = vpack.c.b16 %v944, %v940
    %v1441 = vpack.c.b16 %v945, %v941
    %v1442 = vpack.c.b16 %v946, %v942
    %v1443 = vpack.c.b16 %v947, %v943
    %v1444 = vpack.c.b16 %v952, %v948
    %v1445 = vpack.c.b16 %v953, %v949
    %v1446 = vpack.c.b16 %v954, %v950
    %v1447 = vpack.c.b16 %v955, %v951
    %v1448 = vpack.c.b16 %v960, %v956
    %v1449 = vpack.c.b16 %v961, %v957
    %v1450 = vpack.c.b16 %v962, %v958
    %v1451 = vpack.c.b16 %v963, %v959
    %v1452 = vpack.c.b16 %v968, %v964
    %v1453 = vpack.c.b16 %v969, %v965
    %v1454 = vpack.c.b16 %v970, %v966
    %v1455 = vpack.c.b16 %v971, %v967
    %v1456 = vpack.c.b16 %v976, %v972
    %v1457 = vpack.c.b16 %v977, %v973
    %v1458 = vpack.c.b16 %v978, %v974
    %v1459 = vpack.c.b16 %v979, %v975
    %v1460 = vpack.c.b16 %v984, %v980
    %v1461 = vpack.c.b16 %v985, %v981
    %v1462 = vpack.c.b16 %v986, %v982
    %v1463 = vpack.c.b16 %v987, %v983
    %v1464 = vpack.c.b16 %v992, %v988
    %v1465 = vpack.c.b16 %v993, %v989
    %v1466 = vpack.c.b16 %v994, %v990
    %v1467 = vpack.c.b16 %v995, %v991
    %v1468 = vpack.c.b16 %v1000, %v996
    %v1469 = vpack.c.b16 %v1001, %v997
    %v1470 = vpack.c.b16 %v1002, %v998
    %v1471 = vpack.c.b16 %v1003, %v999
    %v1472 = vpack.c.b16 %v1008, %v1004
    %v1473 = vpack.c.b16 %v1009, %v1005
    %v1474 = vpack.c.b16 %v1010, %v1006
    %v1475 = vpack.c.b16 %v1011, %v1007
    %v1476 = vpack.c.b16 %v1016, %v1012
    %v1477 = vpack.c.b16 %v1017, %v1013
    %v1478 = vpack.c.b16 %v1018, %v1014
    %v1479 = vpack.c.b16 %v1019, %v1015
    %v1480 = vpack.c.b16 %v1024, %v1020
    %v1481 = vpack.c.b16 %v1025, %v1021
    %v1482 = vpack.c.b16 %v1026, %v1022
    %v1483 = vpack.c.b16 %v1027, %v1023
    %v1484 = vpack.c.b16 %v1032, %v1028
    %v1485 = vpack.c.b16 %v1033, %v1029
    %v1486 = vpack.c.b16 %v1034, %v1030
    %v1487 = vpack.c.b16 %v1035, %v1031
    %v1488 = vpack.c.b16 %v1040, %v1036
    %v1489 = vpack.c.b16 %v1041, %v1037
    %v1490 = vpack.c.b16 %v1042, %v1038
    %v1491 = vpack.c.b16 %v1043, %v1039
    %v1492 = vpack.c.b16 %v1048, %v1044
    %v1493 = vpack.c.b16 %v1049, %v1045
    %v1494 = vpack.c.b16 %v1050, %v1046
    %v1495 = vpack.c.b16 %v1051, %v1047
    %v1496 = vpack.c.b16 %v1056, %v1052
    %v1497 = vpack.c.b16 %v1057, %v1053
    %v1498 = vpack.c.b16 %v1058, %v1054
    %v1499 = vpack.c.b16 %v1059, %v1055
    %v1500 = vpack.c.b16 %v1064, %v1060
    %v1501 = vpack.c.b16 %v1065, %v1061
    %v1502 = vpack.c.b16 %v1066, %v1062
    %v1503 = vpack.c.b16 %v1067, %v1063
    %v1504 = vpack.c.b16 %v1072, %v1068
    %v1505 = vpack.c.b16 %v1073, %v1069
    %v1506 = vpack.c.b16 %v1074, %v1070
    %v1507 = vpack.c.b16 %v1075, %v1071
    %v1508 = vpack.c.b16 %v1080, %v1076
    %v1509 = vpack.c.b16 %v1081, %v1077
    %v1510 = vpack.c.b16 %v1082, %v1078
    %v1511 = vpack.c.b16 %v1083, %v1079
    %v1512 = vpack.c.b16 %v1088, %v1084
    %v1513 = vpack.c.b16 %v1089, %v1085
    %v1514 = vpack.c.b16 %v1090, %v1086
    %v1515 = vpack.c.b16 %v1091, %v1087
    %v1516 = vpack.c.b16 %v1096, %v1092
    %v1517 = vpack.c.b16 %v1097, %v1093
    %v1518 = vpack.c.b16 %v1098, %v1094
    %v1519 = vpack.c.b16 %v1099, %v1095
    %v1520 = vpack.c.b16 %v1104, %v1100
    %v1521 = vpack.c.b16 %v1105, %v1101
    %v1522 = vpack.c.b16 %v1106, %v1102
    %v1523 = vpack.c.b16 %v1107, %v1103
    %v1524 = vpack.c.b16 %v1112, %v1108
    %v1525 = vpack.c.b16 %v1113, %v1109
    %v1526 = vpack.c.b16 %v1114, %v1110
    %v1527 = vpack.c.b16 %v1115, %v1111
    %v1528 = vpack.c.b16 %v1120, %v1116
    %v1529 = vpack.c.b16 %v1121, %v1117
    %v1530 = vpack.c.b16 %v1122, %v1118
    %v1531 = vpack.c.b16 %v1123, %v1119
    %v1532 = vpack.c.b16 %v1128, %v1124
    %v1533 = vpack.c.b16 %v1129, %v1125
    %v1534 = vpack.c.b16 %v1130, %v1126
    %v1535 = vpack.c.b16 %v1131, %v1127
    %v1536 = vpack.c.b16 %v1136, %v1132
    %v1537 = vpack.c.b16 %v1137, %v1133
    %v1538 = vpack.c.b16 %v1138, %v1134
    %v1539 = vpack.c.b16 %v1139, %v1135
    %v1540 = vpack.c.b16 %v1144, %v1140
    %v1541 = vpack.c.b16 %v1145, %v1141
    %v1542 = vpack.c.b16 %v1146, %v1142
    %v1543 = vpack.c.b16 %v1147, %v1143
    %v1544 = vpack.c.b16 %v1152, %v1148
    %v1545 = vpack.c.b16 %v1153, %v1149
    %v1546 = vpack.c.b16 %v1154, %v1150
    %v1547 = vpack.c.b16 %v1155, %v1151
    %v1548 = vpack.c.b16 %v1160, %v1156
    %v1549 = vpack.c.b16 %v1161, %v1157
    %v1550 = vpack.c.b16 %v1162, %v1158
    %v1551 = vpack.c.b16 %v1163, %v1159
    %v1552 = vpack.c.b16 %v1168, %v1164
    %v1553 = vpack.c.b16 %v1169, %v1165
    %v1554 = vpack.c.b16 %v1170, %v1166
    %v1555 = vpack.c.b16 %v1171, %v1167
    %v1556 = vpack.c.b16 %v1176, %v1172
    %v1557 = vpack.c.b16 %v1177, %v1173
    %v1558 = vpack.c.b16 %v1178, %v1174
    %v1559 = vpack.c.b16 %v1179, %v1175
    %v1560 = vpack.c.b16 %v1184, %v1180
    %v1561 = vpack.c.b16 %v1185, %v1181
    %v1562 = vpack.c.b16 %v1186, %v1182
    %v1563 = vpack.c.b16 %v1187, %v1183
    %v1564 = vpack.c.b16 %v1192, %v1188
    %v1565 = vpack.c.b16 %v1193, %v1189
    %v1566 = vpack.c.b16 %v1194, %v1190
    %v1567 = vpack.c.b16 %v1195, %v1191
    %v1568 = vpack.c.b16 %v1200, %v1196
    %v1569 = vpack.c.b16 %v1201, %v1197
    %v1570 = vpack.c.b16 %v1202, %v1198
    %v1571 = vpack.c.b16 %v1203, %v1199
    %v1572 = vpack.c.b16 %v1208, %v1204
    %v1573 = vpack.c.b16 %v1209, %v1205
    %v1574 = vpack.c.b16 %v1210, %v1206
    %v1575 = vpack.c.b16 %v1211, %v1207
    %v1576 = vpack.c.b16 %v1216, %v1212
    %v1577 = vpack.c.b16 %v1217, %v1213
    %v1578 = vpack.c.b16 %v1218, %v1214
    %v1579 = vpack.c.b16 %v1219, %v1215
    %v1580 = vpack.c.b16 %v1224, %v1220
    %v1581 = vpack.c.b16 %v1225, %v1221
    %v1582 = vpack.c.b16 %v1226, %v1222
    %v1583 = vpack.c.b16 %v1227, %v1223
    %v1584 = vpack.c.b16 %v1232, %v1228
    %v1585 = vpack.c.b16 %v1233, %v1229
    %v1586 = vpack.c.b16 %v1234, %v1230
    %v1587 = vpack.c.b16 %v1235, %v1231
    %v1588 = vpack.c.b16 %v1240, %v1236
    %v1589 = vpack.c.b16 %v1241, %v1237
    %v1590 = vpack.c.b16 %v1242, %v1238
    %v1591 = vpack.c.b16 %v1243, %v1239
    %v1592 = vpack.c.b16 %v1248, %v1244
    %v1593 = vpack.c.b16 %v1249, %v1245
    %v1594 = vpack.c.b16 %v1250, %v1246
    %v1595 = vpack.c.b16 %v1251, %v1247
    %v1596 = vpack.c.b16 %v1256, %v1252
    %v1597 = vpack.c.b16 %v1257, %v1253
    %v1598 = vpack.c.b16 %v1258, %v1254
    %v1599 = vpack.c.b16 %v1259, %v1255
    %v1600 = vpack.c.b16 %v1264, %v1260
    %v1601 = vpack.c.b16 %v1265, %v1261
    %v1602 = vpack.c.b16 %v1266, %v1262
    %v1603 = vpack.c.b16 %v1267, %v1263
    %v1604 = vpack.c.b16 %v1272, %v1268
    %v1605 = vpack.c.b16 %v1273, %v1269
    %v1606 = vpack.c.b16 %v1274, %v1270
    %v1607 = vpack.c.b16 %v1275, %v1271
    %v1608 = vpack.c.b16 %v1280, %v1276
    %v1609 = vpack.c.b16 %v1281, %v1277
    %v1610 = vpack.c.b16 %v1282, %v1278
    %v1611 = vpack.c.b16 %v1283, %v1279
    %v1612 = vpack.c.b16 %v1288, %v1284
    %v1613 = vpack.c.b16 %v1289, %v1285
    %v1614 = vpack.c.b16 %v1290, %v1286
    %v1615 = vpack.c.b16 %v1291, %v1287
    %v1616 = vpack.c.b16 %v1296, %v1292
    %v1617 = vpack.c.b16 %v1297, %v1293
    %v1618 = vpack.c.b16 %v1298, %v1294
    %v1619 = vpack.c.b16 %v1299, %v1295
    %v1620 = vpack.c.b16 %v1304, %v1300
    %v1621 = vpack.c.b16 %v1305, %v1301
    %v1622 = vpack.c.b16 %v1306, %v1302
    %v1623 = vpack.c.b16 %v1307, %v1303
    %v1624 = vpack.c.b16 %v1312, %v1308
    %v1625 = vpack.c.b16 %v1313, %v1309
    %v1626 = vpack.c.b16 %v1314, %v1310
    %v1627 = vpack.c.b16 %v1315, %v1311
    %v1628 = vpack.c.b16 %v1320, %v1316
    %v1629 = vpack.c.b16 %v1321, %v1317
    %v1630 = vpack.c.b16 %v1322, %v1318
    %v1631 = vpack.c.b16 %v1323, %v1319
    %v1632 = vpack.c.b16 %v1328, %v1324
    %v1633 = vpack.c.b16 %v1329, %v1325
    %v1634 = vpack.c.b16 %v1330, %v1326
    %v1635 = vpack.c.b16 %v1331, %v1327
    %v1636 = vpack.c.b16 %v1336, %v1332
    %v1637 = vpack.c.b16 %v1337, %v1333
    %v1638 = vpack.c.b16 %v1338, %v1334
    %v1639 = vpack.c.b16 %v1339, %v1335
    %v1640 = vpack.c.b16 %v1344, %v1340
    %v1641 = vpack.c.b16 %v1345, %v1341
    %v1642 = vpack.c.b16 %v1346, %v1342
    %v1643 = vpack.c.b16 %v1347, %v1343
    %v1644 = vpack.c.b16 %v1352, %v1348
    %v1645 = vpack.c.b16 %v1353, %v1349
    %v1646 = vpack.c.b16 %v1354, %v1350
    %v1647 = vpack.c.b16 %v1355, %v1351
    %v1648 = vpack.c.b16 %v1360, %v1356
    %v1649 = vpack.c.b16 %v1361, %v1357
    %v1650 = vpack.c.b16 %v1362, %v1358
    %v1651 = vpack.c.b16 %v1363, %v1359
    %v1652 = vpack.c.b16 %v1368, %v1364
    %v1653 = vpack.c.b16 %v1369, %v1365
    %v1654 = vpack.c.b16 %v1370, %v1366
    %v1655 = vpack.c.b16 %v1371, %v1367
    %v1656 = vpack.c.b16 %v1376, %v1372
    %v1657 = vpack.c.b16 %v1377, %v1373
    %v1658 = vpack.c.b16 %v1378, %v1374
    %v1659 = vpack.c.b16 %v1379, %v1375
    %v1660 = vpack.c.b16 %v1384, %v1380
    %v1661 = vpack.c.b16 %v1385, %v1381
    %v1662 = vpack.c.b16 %v1386, %v1382
    %v1663 = vpack.c.b16 %v1387, %v1383
    %v1664 = vpack.c.b16 %v1392, %v1388
    %v1665 = vpack.c.b16 %v1393, %v1389
    %v1666 = vpack.c.b16 %v1394, %v1390
    %v1667 = vpack.c.b16 %v1395, %v1391
    %v1668 = vpack.c.b16 %v1400, %v1396
    %v1669 = vpack.c.b16 %v1401, %v1397
    %v1670 = vpack.c.b16 %v1402, %v1398
    %v1671 = vpack.c.b16 %v1403, %v1399
    %v1672 = vpack.c.b16 %v1408, %v1404
    %v1673 = vpack.c.b16 %v1409, %v1405
    %v1674 = vpack.c.b16 %v1410, %v1406
    %v1675 = vpack.c.b16 %v1411, %v1407
    %v1676 = vpack.c.b16 %v1416, %v1412
    %v1677 = vpack.c.b16 %v1417, %v1413
    %v1678 = vpack.c.b16 %v1418, %v1414
    %v1679 = vpack.c.b16 %v1419, %v1415
    %v1680 = vpack.c.b16 %v1424, %v1420
    %v1681 = vpack.c.b16 %v1425, %v1421
    %v1682 = vpack.c.b16 %v1426, %v1422
    %v1683 = vpack.c.b16 %v1427, %v1423
    %1940 = vmatprep.subr.bf16.mxu0 %v1429
    %1941 = vmatpush1.bf16.msra.mxu0 %v1428
    %1942 = vmatprep.subr.bf16.mxu0 %v1433
    %1943 = vmatpush1.bf16.msra.mxu0 %v1432
    %1944 = vmatprep.subr.bf16.mxu0 %v1437
    %1945 = vmatpush1.bf16.msra.mxu0 %v1436
    %1946 = vmatprep.subr.bf16.mxu0 %v1441
    %1947 = vmatpush1.bf16.msra.mxu0 %v1440
    %1948 = vmatprep.subr.bf16.mxu0 %v1445
    %1949 = vmatpush1.bf16.msra.mxu0 %v1444
    %1950 = vmatprep.subr.bf16.mxu0 %v1449
    %1951 = vmatpush1.bf16.msra.mxu0 %v1448
    %1952 = vmatprep.subr.bf16.mxu0 %v1453
    %1953 = vmatpush1.bf16.msra.mxu0 %v1452
    %1954 = vmatprep.subr.bf16.mxu0 %v1457
    %1955 = vmatpush1.bf16.msra.mxu0 %v1456
    %1956 = vmatprep.subr.bf16.mxu0 %v1461
    %1957 = vmatpush1.bf16.msra.mxu0 %v1460
    %1958 = vmatprep.subr.bf16.mxu0 %v1465
    %1959 = vmatpush1.bf16.msra.mxu0 %v1464
    %1960 = vmatprep.subr.bf16.mxu0 %v1469
    %1961 = vmatpush1.bf16.msra.mxu0 %v1468
    %1962 = vmatprep.subr.bf16.mxu0 %v1473
    %1963 = vmatpush1.bf16.msra.mxu0 %v1472
    %1964 = vmatprep.subr.bf16.mxu0 %v1477
    %1965 = vmatpush1.bf16.msra.mxu0 %v1476
    %1966 = vmatprep.subr.bf16.mxu0 %v1481
    %1967 = vmatpush1.bf16.msra.mxu0 %v1480
    %1968 = vmatprep.subr.bf16.mxu0 %v1485
    %1969 = vmatpush1.bf16.msra.mxu0 %v1484
    %1970 = vmatprep.subr.bf16.mxu0 %v1489
    %1971 = vmatpush1.bf16.msra.mxu0 %v1488
    %1972 = vmatprep.mubr.bf16.mxu0 %v375
    %1973 = vmatmul.mubr.bf16.gmra.mrb[0].mxu0 %v374
    %v1974 = vpop.f32.mrb[0].mxu0
    %v1975 = vadd.f32 %v643, %v1974
    %v1976 = vpop.f32.mrb[0].mxu0
    %v1977 = vadd.f32 %v647, %v1976
    %v1978 = vpop.f32.mrb[0].mxu0
    %v1979 = vadd.f32 %v643, %v1978
    %v1980 = vpop.f32.mrb[0].mxu0
    %v1981 = vadd.f32 %v647, %v1980
    %1982 = vdwg.mxu0
    %1983 = vmatprep.subr.bf16.mxu0 %v1493
    %1984 = vmatpush1.bf16.msra.mxu0 %v1492
    %1985 = vmatprep.subr.bf16.mxu0 %v1497
    %1986 = vmatpush1.bf16.msra.mxu0 %v1496
    %1987 = vmatprep.subr.bf16.mxu0 %v1501
    %1988 = vmatpush1.bf16.msra.mxu0 %v1500
    %1989 = vmatprep.subr.bf16.mxu0 %v1505
    %1990 = vmatpush1.bf16.msra.mxu0 %v1504
    %1991 = vmatprep.subr.bf16.mxu0 %v1509
    %1992 = vmatpush1.bf16.msra.mxu0 %v1508
    %1993 = vmatprep.subr.bf16.mxu0 %v1513
    %1994 = vmatpush1.bf16.msra.mxu0 %v1512
    %1995 = vmatprep.subr.bf16.mxu0 %v1517
    %1996 = vmatpush1.bf16.msra.mxu0 %v1516
    %1997 = vmatprep.subr.bf16.mxu0 %v1521
    %1998 = vmatpush1.bf16.msra.mxu0 %v1520
    %1999 = vmatprep.subr.bf16.mxu0 %v1525
    %2000 = vmatpush1.bf16.msra.mxu0 %v1524
    %2001 = vmatprep.subr.bf16.mxu0 %v1529
    %2002 = vmatpush1.bf16.msra.mxu0 %v1528
    %2003 = vmatprep.subr.bf16.mxu0 %v1533
    %2004 = vmatpush1.bf16.msra.mxu0 %v1532
    %2005 = vmatprep.subr.bf16.mxu0 %v1537
    %2006 = vmatpush1.bf16.msra.mxu0 %v1536
    %2007 = vmatprep.subr.bf16.mxu0 %v1541
    %2008 = vmatpush1.bf16.msra.mxu0 %v1540
    %2009 = vmatprep.subr.bf16.mxu0 %v1545
    %2010 = vmatpush1.bf16.msra.mxu0 %v1544
    %2011 = vmatprep.subr.bf16.mxu0 %v1549
    %2012 = vmatpush1.bf16.msra.mxu0 %v1548
    %2013 = vmatprep.subr.bf16.mxu0 %v1553
    %2014 = vmatpush1.bf16.msra.mxu0 %v1552
    %2015 = vmatprep.mubr.bf16.mxu0 %v377
    %2016 = vmatmul.mubr.bf16.gmra.mrb[0].mxu0 %v376
    %v2017 = vpop.f32.mrb[0].mxu0
    %v2018 = vadd.f32 %v1975, %v2017
    %v2019 = vpop.f32.mrb[0].mxu0
    %v2020 = vadd.f32 %v1977, %v2019
    %v2021 = vpop.f32.mrb[0].mxu0
    %v2022 = vadd.f32 %v1979, %v2021
    %v2023 = vpop.f32.mrb[0].mxu0
    %v2024 = vadd.f32 %v1981, %v2023
    %2025 = vdwg.mxu0
    %2026 = vmatprep.subr.bf16.mxu0 %v1557
    %2027 = vmatpush1.bf16.msra.mxu0 %v1556
    %2028 = vmatprep.subr.bf16.mxu0 %v1561
    %2029 = vmatpush1.bf16.msra.mxu0 %v1560
    %2030 = vmatprep.subr.bf16.mxu0 %v1565
    %2031 = vmatpush1.bf16.msra.mxu0 %v1564
    %2032 = vmatprep.subr.bf16.mxu0 %v1569
    %2033 = vmatpush1.bf16.msra.mxu0 %v1568
    %2034 = vmatprep.subr.bf16.mxu0 %v1573
    %2035 = vmatpush1.bf16.msra.mxu0 %v1572
    %2036 = vmatprep.subr.bf16.mxu0 %v1577
    %2037 = vmatpush1.bf16.msra.mxu0 %v1576
    %2038 = vmatprep.subr.bf16.mxu0 %v1581
    %2039 = vmatpush1.bf16.msra.mxu0 %v1580
    %2040 = vmatprep.subr.bf16.mxu0 %v1585
    %2041 = vmatpush1.bf16.msra.mxu0 %v1584
    %2042 = vmatprep.subr.bf16.mxu0 %v1589
    %2043 = vmatpush1.bf16.msra.mxu0 %v1588
    %2044 = vmatprep.subr.bf16.mxu0 %v1593
    %2045 = vmatpush1.bf16.msra.mxu0 %v1592
    %2046 = vmatprep.subr.bf16.mxu0 %v1597
    %2047 = vmatpush1.bf16.msra.mxu0 %v1596
    %2048 = vmatprep.subr.bf16.mxu0 %v1601
    %2049 = vmatpush1.bf16.msra.mxu0 %v1600
    %2050 = vmatprep.subr.bf16.mxu0 %v1605
    %2051 = vmatpush1.bf16.msra.mxu0 %v1604
    %2052 = vmatprep.subr.bf16.mxu0 %v1609
    %2053 = vmatpush1.bf16.msra.mxu0 %v1608
    %2054 = vmatprep.subr.bf16.mxu0 %v1613
    %2055 = vmatpush1.bf16.msra.mxu0 %v1612
    %2056 = vmatprep.subr.bf16.mxu0 %v1617
    %2057 = vmatpush1.bf16.msra.mxu0 %v1616
    %2058 = vmatprep.mubr.bf16.mxu0 %v379
    %2059 = vmatmul.mubr.bf16.gmra.mrb[0].mxu0 %v378
    %v2060 = vpop.f32.mrb[0].mxu0
    %v2061 = vadd.f32 %v2018, %v2060
    %v2062 = vpop.f32.mrb[0].mxu0
    %v2063 = vadd.f32 %v2020, %v2062
    %v2064 = vpop.f32.mrb[0].mxu0
    %v2065 = vadd.f32 %v2022, %v2064
    %v2066 = vpop.f32.mrb[0].mxu0
    %v2067 = vadd.f32 %v2024, %v2066
    %2068 = vdwg.mxu0
    %2069 = vmatprep.subr.bf16.mxu0 %v1621
    %2070 = vmatpush1.bf16.msra.mxu0 %v1620
    %2071 = vmatprep.subr.bf16.mxu0 %v1625
    %2072 = vmatpush1.bf16.msra.mxu0 %v1624
    %2073 = vmatprep.subr.bf16.mxu0 %v1629
    %2074 = vmatpush1.bf16.msra.mxu0 %v1628
    %2075 = vmatprep.subr.bf16.mxu0 %v1633
    %2076 = vmatpush1.bf16.msra.mxu0 %v1632
    %2077 = vmatprep.subr.bf16.mxu0 %v1637
    %2078 = vmatpush1.bf16.msra.mxu0 %v1636
    %2079 = vmatprep.subr.bf16.mxu0 %v1641
    %2080 = vmatpush1.bf16.msra.mxu0 %v1640
    %2081 = vmatprep.subr.bf16.mxu0 %v1645
    %2082 = vmatpush1.bf16.msra.mxu0 %v1644
    %2083 = vmatprep.subr.bf16.mxu0 %v1649
    %2084 = vmatpush1.bf16.msra.mxu0 %v1648
    %2085 = vmatprep.subr.bf16.mxu0 %v1653
    %2086 = vmatpush1.bf16.msra.mxu0 %v1652
    %2087 = vmatprep.subr.bf16.mxu0 %v1657
    %2088 = vmatpush1.bf16.msra.mxu0 %v1656
    %2089 = vmatprep.subr.bf16.mxu0 %v1661
    %2090 = vmatpush1.bf16.msra.mxu0 %v1660
    %2091 = vmatprep.subr.bf16.mxu0 %v1665
    %2092 = vmatpush1.bf16.msra.mxu0 %v1664
    %2093 = vmatprep.subr.bf16.mxu0 %v1669
    %2094 = vmatpush1.bf16.msra.mxu0 %v1668
    %2095 = vmatprep.subr.bf16.mxu0 %v1673
    %2096 = vmatpush1.bf16.msra.mxu0 %v1672
    %2097 = vmatprep.subr.bf16.mxu0 %v1677
    %2098 = vmatpush1.bf16.msra.mxu0 %v1676
    %2099 = vmatprep.subr.bf16.mxu0 %v1681
    %2100 = vmatpush1.bf16.msra.mxu0 %v1680
    %2101 = vmatprep.mubr.bf16.mxu0 %v381
    %2102 = vmatmul.mubr.bf16.gmra.mrb[0].mxu0 %v380
    %v2103 = vpop.f32.mrb[0].mxu0
    %v2104 = vadd.f32 %v2061, %v2103
    %v2105 = vpop.f32.mrb[0].mxu0
    %v2106 = vadd.f32 %v2063, %v2105
    %v2107 = vpop.f32.mrb[0].mxu0
    %v2108 = vadd.f32 %v2065, %v2107
    %v2109 = vpop.f32.mrb[0].mxu0
    %v2110 = vadd.f32 %v2067, %v2109
    %2111 = vdwg.mxu0
    %2112 = vmatprep.subr.bf16.mxu0 %v1431
    %2113 = vmatpush1.bf16.msra.mxu0 %v1430
    %2114 = vmatprep.subr.bf16.mxu0 %v1435
    %2115 = vmatpush1.bf16.msra.mxu0 %v1434
    %2116 = vmatprep.subr.bf16.mxu0 %v1439
    %2117 = vmatpush1.bf16.msra.mxu0 %v1438
    %2118 = vmatprep.subr.bf16.mxu0 %v1443
    %2119 = vmatpush1.bf16.msra.mxu0 %v1442
    %2120 = vmatprep.subr.bf16.mxu0 %v1447
    %2121 = vmatpush1.bf16.msra.mxu0 %v1446
    %2122 = vmatprep.subr.bf16.mxu0 %v1451
    %2123 = vmatpush1.bf16.msra.mxu0 %v1450
    %2124 = vmatprep.subr.bf16.mxu0 %v1455
    %2125 = vmatpush1.bf16.msra.mxu0 %v1454
    %2126 = vmatprep.subr.bf16.mxu0 %v1459
    %2127 = vmatpush1.bf16.msra.mxu0 %v1458
    %2128 = vmatprep.subr.bf16.mxu0 %v1463
    %2129 = vmatpush1.bf16.msra.mxu0 %v1462
    %2130 = vmatprep.subr.bf16.mxu0 %v1467
    %2131 = vmatpush1.bf16.msra.mxu0 %v1466
    %2132 = vmatprep.subr.bf16.mxu0 %v1471
    %2133 = vmatpush1.bf16.msra.mxu0 %v1470
    %2134 = vmatprep.subr.bf16.mxu0 %v1475
    %2135 = vmatpush1.bf16.msra.mxu0 %v1474
    %2136 = vmatprep.subr.bf16.mxu0 %v1479
    %2137 = vmatpush1.bf16.msra.mxu0 %v1478
    %2138 = vmatprep.subr.bf16.mxu0 %v1483
    %2139 = vmatpush1.bf16.msra.mxu0 %v1482
    %2140 = vmatprep.subr.bf16.mxu0 %v1487
    %2141 = vmatpush1.bf16.msra.mxu0 %v1486
    %2142 = vmatprep.subr.bf16.mxu0 %v1491
    %2143 = vmatpush1.bf16.msra.mxu0 %v1490
    %2144 = vmatprep.mubr.bf16.mxu0 %v375
    %2145 = vmatmul.mubr.bf16.gmra.mrb[0].mxu0 %v374
    %v2146 = vpop.f32.mrb[0].mxu0
    %v2147 = vadd.f32 %v651, %v2146
    %v2148 = vpop.f32.mrb[0].mxu0
    %v2149 = vadd.f32 %v655, %v2148
    %v2150 = vpop.f32.mrb[0].mxu0
    %v2151 = vadd.f32 %v651, %v2150
    %v2152 = vpop.f32.mrb[0].mxu0
    %v2153 = vadd.f32 %v655, %v2152
    %2154 = vdwg.mxu0
    %2155 = vmatprep.subr.bf16.mxu0 %v1495
    %2156 = vmatpush1.bf16.msra.mxu0 %v1494
    %2157 = vmatprep.subr.bf16.mxu0 %v1499
    %2158 = vmatpush1.bf16.msra.mxu0 %v1498
    %2159 = vmatprep.subr.bf16.mxu0 %v1503
    %2160 = vmatpush1.bf16.msra.mxu0 %v1502
    %2161 = vmatprep.subr.bf16.mxu0 %v1507
    %2162 = vmatpush1.bf16.msra.mxu0 %v1506
    %2163 = vmatprep.subr.bf16.mxu0 %v1511
    %2164 = vmatpush1.bf16.msra.mxu0 %v1510
    %2165 = vmatprep.subr.bf16.mxu0 %v1515
    %2166 = vmatpush1.bf16.msra.mxu0 %v1514
    %2167 = vmatprep.subr.bf16.mxu0 %v1519
    %2168 = vmatpush1.bf16.msra.mxu0 %v1518
    %2169 = vmatprep.subr.bf16.mxu0 %v1523
    %2170 = vmatpush1.bf16.msra.mxu0 %v1522
    %2171 = vmatprep.subr.bf16.mxu0 %v1527
    %2172 = vmatpush1.bf16.msra.mxu0 %v1526
    %2173 = vmatprep.subr.bf16.mxu0 %v1531
    %2174 = vmatpush1.bf16.msra.mxu0 %v1530
    %2175 = vmatprep.subr.bf16.mxu0 %v1535
    %2176 = vmatpush1.bf16.msra.mxu0 %v1534
    %2177 = vmatprep.subr.bf16.mxu0 %v1539
    %2178 = vmatpush1.bf16.msra.mxu0 %v1538
    %2179 = vmatprep.subr.bf16.mxu0 %v1543
    %2180 = vmatpush1.bf16.msra.mxu0 %v1542
    %2181 = vmatprep.subr.bf16.mxu0 %v1547
    %2182 = vmatpush1.bf16.msra.mxu0 %v1546
    %2183 = vmatprep.subr.bf16.mxu0 %v1551
    %2184 = vmatpush1.bf16.msra.mxu0 %v1550
    %2185 = vmatprep.subr.bf16.mxu0 %v1555
    %2186 = vmatpush1.bf16.msra.mxu0 %v1554
    %2187 = vmatprep.mubr.bf16.mxu0 %v377
    %2188 = vmatmul.mubr.bf16.gmra.mrb[0].mxu0 %v376
    %v2189 = vpop.f32.mrb[0].mxu0
    %v2190 = vadd.f32 %v2147, %v2189
    %v2191 = vpop.f32.mrb[0].mxu0
    %v2192 = vadd.f32 %v2149, %v2191
    %v2193 = vpop.f32.mrb[0].mxu0
    %v2194 = vadd.f32 %v2151, %v2193
    %v2195 = vpop.f32.mrb[0].mxu0
    %v2196 = vadd.f32 %v2153, %v2195
    %2197 = vdwg.mxu0
    %2198 = vmatprep.subr.bf16.mxu0 %v1559
    %2199 = vmatpush1.bf16.msra.mxu0 %v1558
    %2200 = vmatprep.subr.bf16.mxu0 %v1563
    %2201 = vmatpush1.bf16.msra.mxu0 %v1562
    %2202 = vmatprep.subr.bf16.mxu0 %v1567
    %2203 = vmatpush1.bf16.msra.mxu0 %v1566
    %2204 = vmatprep.subr.bf16.mxu0 %v1571
    %2205 = vmatpush1.bf16.msra.mxu0 %v1570
    %2206 = vmatprep.subr.bf16.mxu0 %v1575
    %2207 = vmatpush1.bf16.msra.mxu0 %v1574
    %2208 = vmatprep.subr.bf16.mxu0 %v1579
    %2209 = vmatpush1.bf16.msra.mxu0 %v1578
    %2210 = vmatprep.subr.bf16.mxu0 %v1583
    %2211 = vmatpush1.bf16.msra.mxu0 %v1582
    %2212 = vmatprep.subr.bf16.mxu0 %v1587
    %2213 = vmatpush1.bf16.msra.mxu0 %v1586
    %2214 = vmatprep.subr.bf16.mxu0 %v1591
    %2215 = vmatpush1.bf16.msra.mxu0 %v1590
    %2216 = vmatprep.subr.bf16.mxu0 %v1595
    %2217 = vmatpush1.bf16.msra.mxu0 %v1594
    %2218 = vmatprep.subr.bf16.mxu0 %v1599
    %2219 = vmatpush1.bf16.msra.mxu0 %v1598
    %2220 = vmatprep.subr.bf16.mxu0 %v1603
    %2221 = vmatpush1.bf16.msra.mxu0 %v1602
    %2222 = vmatprep.subr.bf16.mxu0 %v1607
    %2223 = vmatpush1.bf16.msra.mxu0 %v1606
    %2224 = vmatprep.subr.bf16.mxu0 %v1611
    %2225 = vmatpush1.bf16.msra.mxu0 %v1610
    %2226 = vmatprep.subr.bf16.mxu0 %v1615
    %2227 = vmatpush1.bf16.msra.mxu0 %v1614
    %2228 = vmatprep.subr.bf16.mxu0 %v1619
    %2229 = vmatpush1.bf16.msra.mxu0 %v1618
    %2230 = vmatprep.mubr.bf16.mxu0 %v379
    %2231 = vmatmul.mubr.bf16.gmra.mrb[0].mxu0 %v378
    %v2232 = vpop.f32.mrb[0].mxu0
    %v2233 = vadd.f32 %v2190, %v2232
    %v2234 = vpop.f32.mrb[0].mxu0
    %v2235 = vadd.f32 %v2192, %v2234
    %v2236 = vpop.f32.mrb[0].mxu0
    %v2237 = vadd.f32 %v2194, %v2236
    %v2238 = vpop.f32.mrb[0].mxu0
    %v2239 = vadd.f32 %v2196, %v2238
    %2240 = vdwg.mxu0
    %2241 = vmatprep.subr.bf16.mxu0 %v1623
    %2242 = vmatpush1.bf16.msra.mxu0 %v1622
    %2243 = vmatprep.subr.bf16.mxu0 %v1627
    %2244 = vmatpush1.bf16.msra.mxu0 %v1626
    %2245 = vmatprep.subr.bf16.mxu0 %v1631
    %2246 = vmatpush1.bf16.msra.mxu0 %v1630
    %2247 = vmatprep.subr.bf16.mxu0 %v1635
    %2248 = vmatpush1.bf16.msra.mxu0 %v1634
    %2249 = vmatprep.subr.bf16.mxu0 %v1639
    %2250 = vmatpush1.bf16.msra.mxu0 %v1638
    %2251 = vmatprep.subr.bf16.mxu0 %v1643
    %2252 = vmatpush1.bf16.msra.mxu0 %v1642
    %2253 = vmatprep.subr.bf16.mxu0 %v1647
    %2254 = vmatpush1.bf16.msra.mxu0 %v1646
    %2255 = vmatprep.subr.bf16.mxu0 %v1651
    %2256 = vmatpush1.bf16.msra.mxu0 %v1650
    %2257 = vmatprep.subr.bf16.mxu0 %v1655
    %2258 = vmatpush1.bf16.msra.mxu0 %v1654
    %2259 = vmatprep.subr.bf16.mxu0 %v1659
    %2260 = vmatpush1.bf16.msra.mxu0 %v1658
    %2261 = vmatprep.subr.bf16.mxu0 %v1663
    %2262 = vmatpush1.bf16.msra.mxu0 %v1662
    %2263 = vmatprep.subr.bf16.mxu0 %v1667
    %2264 = vmatpush1.bf16.msra.mxu0 %v1666
    %2265 = vmatprep.subr.bf16.mxu0 %v1671
    %2266 = vmatpush1.bf16.msra.mxu0 %v1670
    %2267 = vmatprep.subr.bf16.mxu0 %v1675
    %2268 = vmatpush1.bf16.msra.mxu0 %v1674
    %2269 = vmatprep.subr.bf16.mxu0 %v1679
    %2270 = vmatpush1.bf16.msra.mxu0 %v1678
    %2271 = vmatprep.subr.bf16.mxu0 %v1683
    %2272 = vmatpush1.bf16.msra.mxu0 %v1682
    %2273 = vmatprep.mubr.bf16.mxu0 %v381
    %2274 = vmatmul.mubr.bf16.gmra.mrb[0].mxu0 %v380
    %v2275 = vpop.f32.mrb[0].mxu0
    %v2276 = vadd.f32 %v2233, %v2275
    %v2277 = vpop.f32.mrb[0].mxu0
    %v2278 = vadd.f32 %v2235, %v2277
    %v2279 = vpop.f32.mrb[0].mxu0
    %v2280 = vadd.f32 %v2237, %v2279
    %v2281 = vpop.f32.mrb[0].mxu0
    %v2282 = vadd.f32 %v2239, %v2281
    %2283 = vdwg.mxu0
    %v2284 = vmax.f32 %v2104, 0.0
    %v2285 = vmax.f32 %v2106, 0.0
    %v2286 = vmax.f32 %v2276, 0.0
    %v2287 = vmax.f32 %v2278, 0.0
    %v2288 = vmax.f32 %v2108, 0.0
    %v2289 = vmax.f32 %v2110, 0.0
    %v2290 = vmax.f32 %v2280, 0.0
    %v2291 = vmax.f32 %v2282, 0.0
    %v2292 = vpack.c.bf16 %v2288, %v2284
    %v2293 = vpack.c.bf16 %v2289, %v2285
    %v2294 = vpack.c.bf16 %v2290, %v2286
    %v2295 = vpack.c.bf16 %v2291, %v2287
    %v2296 = vld [vmem:[%s5] sm:$0xf]
    %v2297 = vld [vmem:[%s5 + $0x4] sm:$0xf]
    %v2298 = vld [vmem:[%s5 + $0x8] sm:$0xf]
    %v2299 = vld [vmem:[%s5 + $0xc] sm:$0xf]
    %v2300 = vld [vmem:[%s5 + $0x10] sm:$0xf]
    %v2301 = vld [vmem:[%s5 + $0x14] sm:$0xf]
    %v2302 = vld [vmem:[%s5 + $0x18] sm:$0xf]
    %v2303 = vld [vmem:[%s5 + $0x1c] sm:$0xf]
    %v2304 = vld [vmem:[%s5 + $0x20] sm:$0xf]
    %v2305 = vld [vmem:[%s5 + $0x24] sm:$0xf]
    %v2306 = vld [vmem:[%s5 + $0x28] sm:$0xf]
    %v2307 = vld [vmem:[%s5 + $0x2c] sm:$0xf]
    %v2308 = vld [vmem:[%s5 + $0x30] sm:$0xf]
    %v2309 = vld [vmem:[%s5 + $0x34] sm:$0xf]
    %v2310 = vld [vmem:[%s5 + $0x38] sm:$0xf]
    %v2311 = vld [vmem:[%s5 + $0x3c] sm:$0xf]
    %v2312 = vld [vmem:[%s5 + $0x40] sm:$0xf]
    %v2313 = vld [vmem:[%s5 + $0x44] sm:$0xf]
    %v2314 = vld [vmem:[%s5 + $0x48] sm:$0xf]
    %v2315 = vld [vmem:[%s5 + $0x4c] sm:$0xf]
    %v2316 = vld [vmem:[%s5 + $0x50] sm:$0xf]
    %v2317 = vld [vmem:[%s5 + $0x54] sm:$0xf]
    %v2318 = vld [vmem:[%s5 + $0x58] sm:$0xf]
    %v2319 = vld [vmem:[%s5 + $0x5c] sm:$0xf]
    %v2320 = vld [vmem:[%s5 + $0x60] sm:$0xf]
    %v2321 = vld [vmem:[%s5 + $0x64] sm:$0xf]
    %v2322 = vld [vmem:[%s5 + $0x68] sm:$0xf]
    %v2323 = vld [vmem:[%s5 + $0x6c] sm:$0xf]
    %v2324 = vld [vmem:[%s5 + $0x70] sm:$0xf]
    %v2325 = vld [vmem:[%s5 + $0x74] sm:$0xf]
    %v2326 = vld [vmem:[%s5 + $0x78] sm:$0xf]
    %v2327 = vld [vmem:[%s5 + $0x7c] sm:$0xf]
    %v2328 = vld [vmem:[%s5 + $0x80] sm:$0xf]
    %v2329 = vld [vmem:[%s5 + $0x84] sm:$0xf]
    %v2330 = vld [vmem:[%s5 + $0x88] sm:$0xf]
    %v2331 = vld [vmem:[%s5 + $0x8c] sm:$0xf]
    %v2332 = vld [vmem:[%s5 + $0x90] sm:$0xf]
    %v2333 = vld [vmem:[%s5 + $0x94] sm:$0xf]
    %v2334 = vld [vmem:[%s5 + $0x98] sm:$0xf]
    %v2335 = vld [vmem:[%s5 + $0x9c] sm:$0xf]
    %v2336 = vld [vmem:[%s5 + $0xa0] sm:$0xf]
    %v2337 = vld [vmem:[%s5 + $0xa4] sm:$0xf]
    %v2338 = vld [vmem:[%s5 + $0xa8] sm:$0xf]
    %v2339 = vld [vmem:[%s5 + $0xac] sm:$0xf]
    %v2340 = vld [vmem:[%s5 + $0xb0] sm:$0xf]
    %v2341 = vld [vmem:[%s5 + $0xb4] sm:$0xf]
    %v2342 = vld [vmem:[%s5 + $0xb8] sm:$0xf]
    %v2343 = vld [vmem:[%s5 + $0xbc] sm:$0xf]
    %v2344 = vld [vmem:[%s5 + $0xc0] sm:$0xf]
    %v2345 = vld [vmem:[%s5 + $0xc4] sm:$0xf]
    %v2346 = vld [vmem:[%s5 + $0xc8] sm:$0xf]
    %v2347 = vld [vmem:[%s5 + $0xcc] sm:$0xf]
    %v2348 = vld [vmem:[%s5 + $0xd0] sm:$0xf]
    %v2349 = vld [vmem:[%s5 + $0xd4] sm:$0xf]
    %v2350 = vld [vmem:[%s5 + $0xd8] sm:$0xf]
    %v2351 = vld [vmem:[%s5 + $0xdc] sm:$0xf]
    %v2352 = vld [vmem:[%s5 + $0xe0] sm:$0xf]
    %v2353 = vld [vmem:[%s5 + $0xe4] sm:$0xf]
    %v2354 = vld [vmem:[%s5 + $0xe8] sm:$0xf]
    %v2355 = vld [vmem:[%s5 + $0xec] sm:$0xf]
    %v2356 = vld [vmem:[%s5 + $0xf0] sm:$0xf]
    %v2357 = vld [vmem:[%s5 + $0xf4] sm:$0xf]
    %v2358 = vld [vmem:[%s5 + $0xf8] sm:$0xf]
    %v2359 = vld [vmem:[%s5 + $0xfc] sm:$0xf]
    %v2360 = vld [vmem:[%s6] sm:$0x1]
    %v2362 = vlaneseq
    %v2363 = vshrl.u32 %v2362, 7
    %v2364 = vsub.s32 0, %v2363
    %v2365 = vrot.slane %v2360, %v2364
    %v2431 = vunpack.c.l.b16 %v2296
    %v2432 = vunpack.c.l.b16 %v2297
    %v2433 = vunpack.c.l.b16 %v2298
    %v2434 = vunpack.c.l.b16 %v2299
    %v2435 = vunpack.c.l.b16 %v2300
    %v2436 = vunpack.c.l.b16 %v2301
    %v2437 = vunpack.c.l.b16 %v2302
    %v2438 = vunpack.c.l.b16 %v2303
    %v2439 = vunpack.c.l.b16 %v2304
    %v2440 = vunpack.c.l.b16 %v2305
    %v2441 = vunpack.c.l.b16 %v2306
    %v2442 = vunpack.c.l.b16 %v2307
    %v2443 = vunpack.c.l.b16 %v2308
    %v2444 = vunpack.c.l.b16 %v2309
    %v2445 = vunpack.c.l.b16 %v2310
    %v2446 = vunpack.c.l.b16 %v2311
    %v2447 = vunpack.c.l.b16 %v2312
    %v2448 = vunpack.c.l.b16 %v2313
    %v2449 = vunpack.c.l.b16 %v2314
    %v2450 = vunpack.c.l.b16 %v2315
    %v2451 = vunpack.c.l.b16 %v2316
    %v2452 = vunpack.c.l.b16 %v2317
    %v2453 = vunpack.c.l.b16 %v2318
    %v2454 = vunpack.c.l.b16 %v2319
    %v2455 = vunpack.c.l.b16 %v2320
    %v2456 = vunpack.c.l.b16 %v2321
    %v2457 = vunpack.c.l.b16 %v2322
    %v2458 = vunpack.c.l.b16 %v2323
    %v2459 = vunpack.c.l.b16 %v2324
    %v2460 = vunpack.c.l.b16 %v2325
    %v2461 = vunpack.c.l.b16 %v2326
    %v2462 = vunpack.c.l.b16 %v2327
    %v2463 = vunpack.c.l.b16 %v2328
    %v2464 = vunpack.c.l.b16 %v2329
    %v2465 = vunpack.c.l.b16 %v2330
    %v2466 = vunpack.c.l.b16 %v2331
    %v2467 = vunpack.c.l.b16 %v2332
    %v2468 = vunpack.c.l.b16 %v2333
    %v2469 = vunpack.c.l.b16 %v2334
    %v2470 = vunpack.c.l.b16 %v2335
    %v2471 = vunpack.c.l.b16 %v2336
    %v2472 = vunpack.c.l.b16 %v2337
    %v2473 = vunpack.c.l.b16 %v2338
    %v2474 = vunpack.c.l.b16 %v2339
    %v2475 = vunpack.c.l.b16 %v2340
    %v2476 = vunpack.c.l.b16 %v2341
    %v2477 = vunpack.c.l.b16 %v2342
    %v2478 = vunpack.c.l.b16 %v2343
    %v2479 = vunpack.c.l.b16 %v2344
    %v2480 = vunpack.c.l.b16 %v2345
    %v2481 = vunpack.c.l.b16 %v2346
    %v2482 = vunpack.c.l.b16 %v2347
    %v2483 = vunpack.c.l.b16 %v2348
    %v2484 = vunpack.c.l.b16 %v2349
    %v2485 = vunpack.c.l.b16 %v2350
    %v2486 = vunpack.c.l.b16 %v2351
    %v2487 = vunpack.c.l.b16 %v2352
    %v2488 = vunpack.c.l.b16 %v2353
    %v2489 = vunpack.c.l.b16 %v2354
    %v2490 = vunpack.c.l.b16 %v2355
    %v2491 = vunpack.c.l.b16 %v2356
    %v2492 = vunpack.c.l.b16 %v2357
    %v2493 = vunpack.c.l.b16 %v2358
    %v2494 = vunpack.c.l.b16 %v2359
    %v2495 = vpack.c.b16 %v2432, %v2431
    %v2496 = vpack.c.b16 %v2434, %v2433
    %v2497 = vpack.c.b16 %v2436, %v2435
    %v2498 = vpack.c.b16 %v2438, %v2437
    %v2499 = vpack.c.b16 %v2440, %v2439
    %v2500 = vpack.c.b16 %v2442, %v2441
    %v2501 = vpack.c.b16 %v2444, %v2443
    %v2502 = vpack.c.b16 %v2446, %v2445
    %v2503 = vpack.c.b16 %v2448, %v2447
    %v2504 = vpack.c.b16 %v2450, %v2449
    %v2505 = vpack.c.b16 %v2452, %v2451
    %v2506 = vpack.c.b16 %v2454, %v2453
    %v2507 = vpack.c.b16 %v2456, %v2455
    %v2508 = vpack.c.b16 %v2458, %v2457
    %v2509 = vpack.c.b16 %v2460, %v2459
    %v2510 = vpack.c.b16 %v2462, %v2461
    %v2511 = vpack.c.b16 %v2464, %v2463
    %v2512 = vpack.c.b16 %v2466, %v2465
    %v2513 = vpack.c.b16 %v2468, %v2467
    %v2514 = vpack.c.b16 %v2470, %v2469
    %v2515 = vpack.c.b16 %v2472, %v2471
    %v2516 = vpack.c.b16 %v2474, %v2473
    %v2517 = vpack.c.b16 %v2476, %v2475
    %v2518 = vpack.c.b16 %v2478, %v2477
    %v2519 = vpack.c.b16 %v2480, %v2479
    %v2520 = vpack.c.b16 %v2482, %v2481
    %v2521 = vpack.c.b16 %v2484, %v2483
    %v2522 = vpack.c.b16 %v2486, %v2485
    %v2523 = vpack.c.b16 %v2488, %v2487
    %v2524 = vpack.c.b16 %v2490, %v2489
    %v2525 = vpack.c.b16 %v2492, %v2491
    %v2526 = vpack.c.b16 %v2494, %v2493
    %2559 = vmatprep.subr.bf16.mxu0 0
    %2560 = vmatpush1.bf16.msra.mxu0 %v2495
    %2561 = vmatprep.subr.bf16.mxu0 0
    %2562 = vmatpush1.bf16.msra.mxu0 %v2496
    %2563 = vmatprep.subr.bf16.mxu0 0
    %2564 = vmatpush1.bf16.msra.mxu0 %v2497
    %2565 = vmatprep.subr.bf16.mxu0 0
    %2566 = vmatpush1.bf16.msra.mxu0 %v2498
    %2567 = vmatprep.subr.bf16.mxu0 0
    %2568 = vmatpush1.bf16.msra.mxu0 %v2499
    %2569 = vmatprep.subr.bf16.mxu0 0
    %2570 = vmatpush1.bf16.msra.mxu0 %v2500
    %2571 = vmatprep.subr.bf16.mxu0 0
    %2572 = vmatpush1.bf16.msra.mxu0 %v2501
    %2573 = vmatprep.subr.bf16.mxu0 0
    %2574 = vmatpush1.bf16.msra.mxu0 %v2502
    %2575 = vmatprep.subr.bf16.mxu0 0
    %2576 = vmatpush1.bf16.msra.mxu0 %v2503
    %2577 = vmatprep.subr.bf16.mxu0 0
    %2578 = vmatpush1.bf16.msra.mxu0 %v2504
    %2579 = vmatprep.subr.bf16.mxu0 0
    %2580 = vmatpush1.bf16.msra.mxu0 %v2505
    %2581 = vmatprep.subr.bf16.mxu0 0
    %2582 = vmatpush1.bf16.msra.mxu0 %v2506
    %2583 = vmatprep.subr.bf16.mxu0 0
    %2584 = vmatpush1.bf16.msra.mxu0 %v2507
    %2585 = vmatprep.subr.bf16.mxu0 0
    %2586 = vmatpush1.bf16.msra.mxu0 %v2508
    %2587 = vmatprep.subr.bf16.mxu0 0
    %2588 = vmatpush1.bf16.msra.mxu0 %v2509
    %2589 = vmatprep.subr.bf16.mxu0 0
    %2590 = vmatpush1.bf16.msra.mxu0 %v2510
    %2591 = vmatprep.mubr.bf16.mxu0 %v2293
    %2592 = vmatmul.mubr.bf16.gmra.mrb[0].mxu0 %v2292
    %v2593 = vpop.f32.mrb[0].mxu0
    %v2594 = vadd.f32 %v2365, %v2593
    %v2595 = vpop.f32.mrb[0].mxu0
    %v2596 = vpop.f32.mrb[0].mxu0
    %v2597 = vadd.f32 %v2365, %v2596
    %v2598 = vpop.f32.mrb[0].mxu0
    %2599 = vdwg.mxu0
    %2600 = vmatprep.subr.bf16.mxu0 0
    %2601 = vmatpush1.bf16.msra.mxu0 %v2511
    %2602 = vmatprep.subr.bf16.mxu0 0
    %2603 = vmatpush1.bf16.msra.mxu0 %v2512
    %2604 = vmatprep.subr.bf16.mxu0 0
    %2605 = vmatpush1.bf16.msra.mxu0 %v2513
    %2606 = vmatprep.subr.bf16.mxu0 0
    %2607 = vmatpush1.bf16.msra.mxu0 %v2514
    %2608 = vmatprep.subr.bf16.mxu0 0
    %2609 = vmatpush1.bf16.msra.mxu0 %v2515
    %2610 = vmatprep.subr.bf16.mxu0 0
    %2611 = vmatpush1.bf16.msra.mxu0 %v2516
    %2612 = vmatprep.subr.bf16.mxu0 0
    %2613 = vmatpush1.bf16.msra.mxu0 %v2517
    %2614 = vmatprep.subr.bf16.mxu0 0
    %2615 = vmatpush1.bf16.msra.mxu0 %v2518
    %2616 = vmatprep.subr.bf16.mxu0 0
    %2617 = vmatpush1.bf16.msra.mxu0 %v2519
    %2618 = vmatprep.subr.bf16.mxu0 0
    %2619 = vmatpush1.bf16.msra.mxu0 %v2520
    %2620 = vmatprep.subr.bf16.mxu0 0
    %2621 = vmatpush1.bf16.msra.mxu0 %v2521
    %2622 = vmatprep.subr.bf16.mxu0 0
    %2623 = vmatpush1.bf16.msra.mxu0 %v2522
    %2624 = vmatprep.subr.bf16.mxu0 0
    %2625 = vmatpush1.bf16.msra.mxu0 %v2523
    %2626 = vmatprep.subr.bf16.mxu0 0
    %2627 = vmatpush1.bf16.msra.mxu0 %v2524
    %2628 = vmatprep.subr.bf16.mxu0 0
    %2629 = vmatpush1.bf16.msra.mxu0 %v2525
    %2630 = vmatprep.subr.bf16.mxu0 0
    %2631 = vmatpush1.bf16.msra.mxu0 %v2526
    %2632 = vmatprep.mubr.bf16.mxu0 %v2295
    %2633 = vmatmul.mubr.bf16.gmra.mrb[0].mxu0 %v2294
    %v2634 = vpop.f32.mrb[0].mxu0
    %v2635 = vadd.f32 %v2594, %v2634
    %v2636 = vpop.f32.mrb[0].mxu0
    %v2637 = vpop.f32.mrb[0].mxu0
    %v2638 = vadd.f32 %v2597, %v2637
    %v2639 = vpop.f32.mrb[0].mxu0
    %2640 = vdwg.mxu0
    %vm2641 = vcmask 130048
    %2642 = vst.msk [vmem:[%s7] sm:$0xff] %vm2641, %v2635
    %2643 = vst.msk [vmem:[%s7 + $0x8] sm:$0xff] %vm2641, %v2638
    // Predicated region
    $region34: #{mlp_forward.1} parent=1 // pred_check
      _
    $region35: #{mlp_forward.1} parent=1 // pred_check_branch
      %2645 = sbr.rel (0) target = $region37
    $region36: #{mlp_forward.1} parent=1 // pred_region
      _
    $region37: #{mlp_forward.1} parent=1 // pred_fallthru
      _
    // Predicated region
    $region38: #{mlp_forward.1} parent=1 // pred_check
      _
    $region39: #{mlp_forward.1} parent=1 // pred_check_branch
      %2647 = sbr.rel (0) target = $region41
    $region40: #{mlp_forward.1} parent=1 // pred_region
      _
    $region41: #{mlp_forward.1} parent=1 // pred_fallthru
      _
    %2648 = vsyncpa [#allocation3], 1

</llo_original>
